<compile_context>
chip_gen: v7x
topology: tpu7x:2x2x1
jax: 0.10.0
libtpu: 0.0.40
codegen_flags: <defaults>
</compile_context>

<pallas_src>
import numpy as np

import jax
import jax.numpy as jnp
from jax.experimental import pallas as pl
from jax.experimental.pallas import tpu as pltpu


HIDDEN = 20                       # hidden_size in the PyTorch module
HPAD = 32                         # padded hidden per direction (32-lane gate stripes)
NGATES = 4                        # PyTorch gate order: i, f, g, o
GATE_COLS = NGATES * 2 * HPAD     # 256 fused gate cols: [i_f i_b f_f f_b g_f g_b o_f o_b]
STATE_COLS = 2 * HPAD             # 64 fused state cols: [h_f | h_b] / [c_f | c_b]


def words_rnn_kernel(x_ref, wx_ref, bias_ref, scale_ref, whh_ref, wln_ref, bln_ref, y_ref):
    """Fused x-projection + bidirectional-LSTM recurrence + Linear + sigmoid.

    x_ref    : (B, T, F) batch-first input.
    wx_ref   : (F, 2*GATE_COLS) f32 input-projection weight; cols 0:G = fwd stripes,
               cols G:2G = bwd stripes (unused stripes are zero).
    bias_ref : (1, 2*GATE_COLS) f32 combined (ih+hh, both directions) bias, packed into
               the fwd half so it is added exactly once per step.
    scale_ref: (1, GATE_COLS) f32 activation scale (0.5 on i/f/o stripes, 1.0 on g).
    whh_ref  : (STATE_COLS, GATE_COLS) bf16 block-diagonal recurrent weight (both dirs).
    wln_ref  : (2*STATE_COLS, O) bf16 stacked Linear weight [h slab ; c slab].
    bln_ref  : (1, O) f32 Linear bias.     y_ref: (B, O) f32 output.
    """
    B, T, F = x_ref.shape
    S, G = whh_ref.shape                        # (64, 256)

    # ---- fused input projection: no recurrent dependency, off the serial chain ----
    # One matmul (kept f32 for accuracy; it is a one-off, not on the critical path).
    x2 = x_ref[...].reshape(B * T, F)
    gx = (jnp.dot(x2, wx_ref[...], preferred_element_type=jnp.float32)
          + bias_ref[...]).reshape(B, T, 2 * G)

    scale = scale_ref[...]                      # hoisted: reused every step
    shift = 1.0 - scale
    whh = whh_ref[...]                          # bf16, resident for all steps
    # TODO(synk): make whh weight-stationary in the MXU (pltpu.matmul_push_rhs /
    #             matmul_acc_lhs / matmul_pop) to take the per-step weight load off
    #             the serial chain; on v7x also check the gx+dot fuses into an MRB
    #             in-place accumulate.

    h = jnp.zeros((B, S), jnp.float32)          # [h_fwd | h_bwd]; padded cols stay 0
    c = jnp.zeros((B, S), jnp.float32)

    # T is small & static -> fully unroll so the scheduler can overlap the EUP/VPU
    # work with the single serialized bf16 MXU matmul per step.
    # TODO(synk): for large T, stream gx blocks with a fori_loop / emit_pipeline.
    for t in range(T):
        gates = (gx[:, t, 0:G] + gx[:, T - 1 - t, G:2 * G]
                 + jnp.dot(h.astype(jnp.bfloat16), whh,
                           preferred_element_type=jnp.float32))
        # sigmoid(z) = 0.5*tanh(z/2)+0.5  ->  one full-width tanh + per-lane affine.
        act = jnp.tanh(gates * scale) * scale + shift
        i = act[:, 0 * S:1 * S]                 # both directions at once
        f = act[:, 1 * S:2 * S]
        g = act[:, 2 * S:3 * S]
        o = act[:, 3 * S:4 * S]
        c = f * c + i * g
        h = o * jnp.tanh(c)

    # Epilogue: single merged Linear over [h | c] (no lane-axis concat of 4 pieces).
    # O is tiny so the (B, O) store is a masked sub-vreg store; pad O to a multiple
    # of 128 if out_features ever grows.
    hc = jnp.concatenate([h, c], axis=-1).astype(jnp.bfloat16)      # (B, 2S)
    out = (jnp.dot(hc, wln_ref[...], preferred_element_type=jnp.float32)
           + bln_ref[...])
    y_ref[...] = jax.nn.sigmoid(out)


def words_rnn_forward(x_btf, kp):
    """x_btf: (B, T, F) batch-first input (like PyTorch). Returns (B, out_features)."""
    B = x_btf.shape[0]
    O = kp["b_ln"].shape[1]
    vmem = pl.BlockSpec(memory_space=pltpu.MemorySpace.VMEM)
    return pl.pallas_call(
        words_rnn_kernel,
        out_shape=jax.ShapeDtypeStruct((B, O), jnp.float32),
        in_specs=[vmem] * 7,
        out_specs=vmem,
    )(x_btf, kp["wx"], kp["bias"], kp["gate_scale"], kp["whh"], kp["wln"], kp["b_ln"])


def make_params(key, in_features, out_features, hidden=HIDDEN):
    """Synthetic parameters with the same shapes PyTorch nn.LSTM / nn.Linear use."""
    ks = jax.random.split(key, 10)
    H4 = 4 * hidden

    def nrm(k, shape):
        return (0.1 * jax.random.normal(k, shape)).astype(jnp.float32)

    return dict(
        w_ih_f=nrm(ks[0], (H4, in_features)),          # weight_ih_l0
        w_hh_f=nrm(ks[1], (H4, hidden)),               # weight_hh_l0
        b_f=nrm(ks[2], (H4,)) + nrm(ks[3], (H4,)),     # bias_ih_l0 + bias_hh_l0
        w_ih_b=nrm(ks[4], (H4, in_features)),          # weight_ih_l0_reverse
        w_hh_b=nrm(ks[5], (H4, hidden)),               # weight_hh_l0_reverse
        b_b=nrm(ks[6], (H4,)) + nrm(ks[7], (H4,)),
        w_ln=nrm(ks[8], (out_features, H4)),           # Linear(4*hidden, out)
        b_ln=nrm(ks[9], (out_features,)),
    )


def pack_params(p, in_features, out_features, hidden=HIDDEN, hpad=HPAD):
    """Re-layout PyTorch-shaped params into the padded / direction-fused kernel layout.

    Fused gate column layout (GATE_COLS = 4 gates * 2 dirs * HPAD):
        col = gate * 2*HPAD + dir * HPAD + j   (gate in i,f,g,o; dir 0=fwd, 1=bwd)
    Padded entries (j >= HIDDEN) are zero -> padded state columns stay exactly 0.
    The input-projection weight is (F, 2*GATE_COLS): fwd stripes in the first block,
    bwd stripes in the second block (read time-reversed by the kernel).
    """
    H, Hp, O, F = hidden, hpad, out_features, in_features
    G, S = GATE_COLS, STATE_COLS

    def to_np(a):
        return np.asarray(a, dtype=np.float32)

    w_ih_fT, w_ih_bT = to_np(p["w_ih_f"]).T, to_np(p["w_ih_b"]).T   # (F, 4H)
    w_hh_fT, w_hh_bT = to_np(p["w_hh_f"]).T, to_np(p["w_hh_b"]).T   # (H, 4H)
    b_f_raw, b_b_raw = to_np(p["b_f"]), to_np(p["b_b"])             # (4H,)
    w_lnT = to_np(p["w_ln"]).T                                      # (4H, O)

    wx = np.zeros((F, 2 * G), np.float32)       # [fwd block(G) | bwd block(G)]
    bias = np.zeros((1, 2 * G), np.float32)     # both dirs' bias packed in fwd block
    whh = np.zeros((S, G), np.float32)          # block-diagonal recurrent weight
    scale = np.zeros((1, G), np.float32)        # 0.5 for sigmoid gates, 1.0 for tanh
    for gate in range(NGATES):
        src = slice(gate * H, gate * H + H)
        cf = gate * 2 * Hp              # forward stripe start
        cb = cf + Hp                    # backward stripe start
        wx[:, cf:cf + H] = w_ih_fT[:, src]
        wx[:, G + cb:G + cb + H] = w_ih_bT[:, src]
        bias[0, cf:cf + H] = b_f_raw[src]
        bias[0, cb:cb + H] = b_b_raw[src]
        whh[0:H, cf:cf + H] = w_hh_fT[:, src]
        whh[Hp:Hp + H, cb:cb + H] = w_hh_bT[:, src]
        scale[0, cf:cf + 2 * Hp] = 1.0 if gate == 2 else 0.5   # g -> tanh, else sigmoid

    # Final Linear weight stacked as [h slab ; c slab] so the kernel does ONE matmul
    # on [h | c]:  hc = [h_f(:H), h_b(:H), c_f(:H), c_b(:H)] @ w_ln^T + b_ln.
    wln = np.zeros((2 * S, O), np.float32)
    wln[0:H, :] = w_lnT[0 * H:1 * H]                 # h_fwd
    wln[Hp:Hp + H, :] = w_lnT[1 * H:2 * H]           # h_bwd
    wln[S:S + H, :] = w_lnT[2 * H:3 * H]             # c_fwd
    wln[S + Hp:S + Hp + H, :] = w_lnT[3 * H:4 * H]   # c_bwd

    return dict(
        wx=jnp.asarray(wx),
        bias=jnp.asarray(bias),
        gate_scale=jnp.asarray(scale),
        whh=jnp.asarray(whh).astype(jnp.bfloat16),   # bf16: single-pass MXU per step
        wln=jnp.asarray(wln).astype(jnp.bfloat16),
        b_ln=jnp.asarray(to_np(p["b_ln"]).reshape(1, O)),
    )


def words_rnn_reference(x_btf, p, hidden=HIDDEN):
    """Pure-JAX f32 replica of the PyTorch forward (dropout is a no-op for num_layers=1)."""
    B, T, _ = x_btf.shape
    H = hidden

    def run_dir(w_ih, w_hh, b, reverse):
        h = jnp.zeros((B, H), jnp.float32)
        c = jnp.zeros((B, H), jnp.float32)
        order = range(T - 1, -1, -1) if reverse else range(T)
        for t in order:
            gates = x_btf[:, t, :] @ w_ih.T + h @ w_hh.T + b
            i = jax.nn.sigmoid(gates[:, 0 * H:1 * H])
            f = jax.nn.sigmoid(gates[:, 1 * H:2 * H])
            g = jnp.tanh(gates[:, 2 * H:3 * H])
            o = jax.nn.sigmoid(gates[:, 3 * H:4 * H])
            c = f * c + i * g
            h = o * jnp.tanh(c)
        return h, c

    h_f, c_f = run_dir(p["w_ih_f"], p["w_hh_f"], p["b_f"], reverse=False)
    h_b, c_b = run_dir(p["w_ih_b"], p["w_hh_b"], p["b_b"], reverse=True)
    hc = jnp.concatenate([h_f, h_b, c_f, c_b], axis=1)
    return jax.nn.sigmoid(hc @ p["w_ln"].T + p["b_ln"])


if __name__ == "__main__":
    B, T, F, O = 2, 8, 16, 4   # batch, seq_len, in_features, out_features

    key = jax.random.PRNGKey(0)
    kx, kparam = jax.random.split(key)
    x = jax.random.normal(kx, (B, T, F), dtype=jnp.float32)

    raw_params = make_params(kparam, in_features=F, out_features=O)
    kernel_params = pack_params(raw_params, in_features=F, out_features=O)

    fwd = jax.jit(words_rnn_forward)
    y = jax.block_until_ready(fwd(x, kernel_params))

    y_ref = words_rnn_reference(x, raw_params)
    assert y.shape == (B, O)
    # bf16 MXU operands on the recurrent / epilogue matmuls give ~1e-3-level deltas
    # vs the f32 reference (expected quantization, per the perf review).
    assert jnp.allclose(y, y_ref, atol=2e-2, rtol=2e-2), (y, y_ref)

    print("KERNEL_OK")
</pallas_src>

<mosaic_0001>
module attributes {stable_mosaic.version = 11 : i64} {
  func.func @words_rnn_kernel(%arg0: memref<2x8x16xf32, #tpu.memory_space<vmem>>, %arg1: memref<16x512xf32, #tpu.memory_space<vmem>>, %arg2: memref<1x512xf32, #tpu.memory_space<vmem>>, %arg3: memref<1x256xf32, #tpu.memory_space<vmem>>, %arg4: memref<64x256xbf16, #tpu.memory_space<vmem>>, %arg5: memref<128x4xbf16, #tpu.memory_space<vmem>>, %arg6: memref<1x4xf32, #tpu.memory_space<vmem>>, %arg7: memref<2x4xf32, #tpu.memory_space<vmem>>) attributes {dimension_semantics = [], scalar_prefetch = 0 : i64, scratch_operands = 0 : i64, tpu.core_type = #tpu.core_type<tc>} {
    %c0 = arith.constant 0 : index
    %c0_0 = arith.constant 0 : index
    %c0_1 = arith.constant 0 : index
    %0 = vector.load %arg0[%c0, %c0_0, %c0_1] : memref<2x8x16xf32, #tpu.memory_space<vmem>>, vector<2x8x16xf32>
    %1 = vector.shape_cast %0 : vector<2x8x16xf32> to vector<16x16xf32>
    %c0_2 = arith.constant 0 : index
    %c0_3 = arith.constant 0 : index
    %2 = vector.load %arg1[%c0_2, %c0_3] : memref<16x512xf32, #tpu.memory_space<vmem>>, vector<16x512xf32>
    %cst = arith.constant dense<0.000000e+00> : vector<16x512xf32>
    %3 = tpu.matmul %1, %2, %cst {dimension_numbers = #tpu.dot_dimension_numbers<[1], [0], [0], [1], [0, 0, 1, 1], [], []>} : vector<16x16xf32>, vector<16x512xf32>, vector<16x512xf32> -> vector<16x512xf32>
    %c0_4 = arith.constant 0 : index
    %c0_5 = arith.constant 0 : index
    %4 = vector.load %arg2[%c0_4, %c0_5] : memref<1x512xf32, #tpu.memory_space<vmem>>, vector<1x512xf32>
    %5 = vector.broadcast %4 : vector<1x512xf32> to vector<16x512xf32>
    %6 = arith.addf %3, %5 : vector<16x512xf32>
    %7 = vector.shape_cast %6 : vector<16x512xf32> to vector<2x8x512xf32>
    %c0_6 = arith.constant 0 : index
    %c0_7 = arith.constant 0 : index
    %8 = vector.load %arg3[%c0_6, %c0_7] : memref<1x256xf32, #tpu.memory_space<vmem>>, vector<1x256xf32>
    %cst_8 = arith.constant 1.000000e+00 : f32
    %9 = vector.broadcast %cst_8 : f32 to vector<1x256xf32>
    %10 = arith.subf %9, %8 : vector<1x256xf32>
    %c0_9 = arith.constant 0 : index
    %c0_10 = arith.constant 0 : index
    %11 = vector.load %arg4[%c0_9, %c0_10] : memref<64x256xbf16, #tpu.memory_space<vmem>>, vector<64x256xbf16>
    %cst_11 = arith.constant 0.000000e+00 : f32
    %12 = vector.broadcast %cst_11 : f32 to vector<2x64xf32>
    %cst_12 = arith.constant 0.000000e+00 : f32
    %13 = vector.broadcast %cst_12 : f32 to vector<2x64xf32>
    %14 = vector.extract_strided_slice %7 {offsets = [0, 0, 0], sizes = [2, 1, 256], strides = [1, 1, 1]} : vector<2x8x512xf32> to vector<2x1x256xf32>
    %15 = vector.shape_cast %14 : vector<2x1x256xf32> to vector<2x256xf32>
    %16 = vector.extract_strided_slice %7 {offsets = [0, 7, 256], sizes = [2, 1, 256], strides = [1, 1, 1]} : vector<2x8x512xf32> to vector<2x1x256xf32>
    %17 = vector.shape_cast %16 : vector<2x1x256xf32> to vector<2x256xf32>
    %18 = arith.addf %15, %17 : vector<2x256xf32>
    %19 = arith.truncf %12 : vector<2x64xf32> to vector<2x64xbf16>
    %cst_13 = arith.constant dense<0.000000e+00> : vector<2x256xf32>
    %20 = tpu.matmul %19, %11, %cst_13 {dimension_numbers = #tpu.dot_dimension_numbers<[1], [0], [0], [1], [0, 0, 1, 1], [], []>} : vector<2x64xbf16>, vector<64x256xbf16>, vector<2x256xf32> -> vector<2x256xf32>
    %21 = arith.addf %18, %20 : vector<2x256xf32>
    %22 = vector.broadcast %8 : vector<1x256xf32> to vector<2x256xf32>
    %23 = arith.mulf %21, %22 : vector<2x256xf32>
    %24 = math.tanh %23 : vector<2x256xf32>
    %25 = vector.broadcast %8 : vector<1x256xf32> to vector<2x256xf32>
    %26 = arith.mulf %24, %25 : vector<2x256xf32>
    %27 = vector.broadcast %10 : vector<1x256xf32> to vector<2x256xf32>
    %28 = arith.addf %26, %27 : vector<2x256xf32>
    %29 = vector.extract_strided_slice %28 {offsets = [0, 0], sizes = [2, 64], strides = [1, 1]} : vector<2x256xf32> to vector<2x64xf32>
    %30 = vector.extract_strided_slice %28 {offsets = [0, 64], sizes = [2, 64], strides = [1, 1]} : vector<2x256xf32> to vector<2x64xf32>
    %31 = vector.extract_strided_slice %28 {offsets = [0, 128], sizes = [2, 64], strides = [1, 1]} : vector<2x256xf32> to vector<2x64xf32>
    %32 = vector.extract_strided_slice %28 {offsets = [0, 192], sizes = [2, 64], strides = [1, 1]} : vector<2x256xf32> to vector<2x64xf32>
    %33 = arith.mulf %30, %13 : vector<2x64xf32>
    %34 = arith.mulf %29, %31 : vector<2x64xf32>
    %35 = arith.addf %33, %34 : vector<2x64xf32>
    %36 = math.tanh %35 : vector<2x64xf32>
    %37 = arith.mulf %32, %36 : vector<2x64xf32>
    %38 = vector.extract_strided_slice %7 {offsets = [0, 1, 0], sizes = [2, 1, 256], strides = [1, 1, 1]} : vector<2x8x512xf32> to vector<2x1x256xf32>
    %39 = vector.shape_cast %38 : vector<2x1x256xf32> to vector<2x256xf32>
    %40 = vector.extract_strided_slice %7 {offsets = [0, 6, 256], sizes = [2, 1, 256], strides = [1, 1, 1]} : vector<2x8x512xf32> to vector<2x1x256xf32>
    %41 = vector.shape_cast %40 : vector<2x1x256xf32> to vector<2x256xf32>
    %42 = arith.addf %39, %41 : vector<2x256xf32>
    %43 = arith.truncf %37 : vector<2x64xf32> to vector<2x64xbf16>
    %cst_14 = arith.constant dense<0.000000e+00> : vector<2x256xf32>
    %44 = tpu.matmul %43, %11, %cst_14 {dimension_numbers = #tpu.dot_dimension_numbers<[1], [0], [0], [1], [0, 0, 1, 1], [], []>} : vector<2x64xbf16>, vector<64x256xbf16>, vector<2x256xf32> -> vector<2x256xf32>
    %45 = arith.addf %42, %44 : vector<2x256xf32>
    %46 = vector.broadcast %8 : vector<1x256xf32> to vector<2x256xf32>
    %47 = arith.mulf %45, %46 : vector<2x256xf32>
    %48 = math.tanh %47 : vector<2x256xf32>
    %49 = vector.broadcast %8 : vector<1x256xf32> to vector<2x256xf32>
    %50 = arith.mulf %48, %49 : vector<2x256xf32>
    %51 = vector.broadcast %10 : vector<1x256xf32> to vector<2x256xf32>
    %52 = arith.addf %50, %51 : vector<2x256xf32>
    %53 = vector.extract_strided_slice %52 {offsets = [0, 0], sizes = [2, 64], strides = [1, 1]} : vector<2x256xf32> to vector<2x64xf32>
    %54 = vector.extract_strided_slice %52 {offsets = [0, 64], sizes = [2, 64], strides = [1, 1]} : vector<2x256xf32> to vector<2x64xf32>
    %55 = vector.extract_strided_slice %52 {offsets = [0, 128], sizes = [2, 64], strides = [1, 1]} : vector<2x256xf32> to vector<2x64xf32>
    %56 = vector.extract_strided_slice %52 {offsets = [0, 192], sizes = [2, 64], strides = [1, 1]} : vector<2x256xf32> to vector<2x64xf32>
    %57 = arith.mulf %54, %35 : vector<2x64xf32>
    %58 = arith.mulf %53, %55 : vector<2x64xf32>
    %59 = arith.addf %57, %58 : vector<2x64xf32>
    %60 = math.tanh %59 : vector<2x64xf32>
    %61 = arith.mulf %56, %60 : vector<2x64xf32>
    %62 = vector.extract_strided_slice %7 {offsets = [0, 2, 0], sizes = [2, 1, 256], strides = [1, 1, 1]} : vector<2x8x512xf32> to vector<2x1x256xf32>
    %63 = vector.shape_cast %62 : vector<2x1x256xf32> to vector<2x256xf32>
    %64 = vector.extract_strided_slice %7 {offsets = [0, 5, 256], sizes = [2, 1, 256], strides = [1, 1, 1]} : vector<2x8x512xf32> to vector<2x1x256xf32>
    %65 = vector.shape_cast %64 : vector<2x1x256xf32> to vector<2x256xf32>
    %66 = arith.addf %63, %65 : vector<2x256xf32>
    %67 = arith.truncf %61 : vector<2x64xf32> to vector<2x64xbf16>
    %cst_15 = arith.constant dense<0.000000e+00> : vector<2x256xf32>
    %68 = tpu.matmul %67, %11, %cst_15 {dimension_numbers = #tpu.dot_dimension_numbers<[1], [0], [0], [1], [0, 0, 1, 1], [], []>} : vector<2x64xbf16>, vector<64x256xbf16>, vector<2x256xf32> -> vector<2x256xf32>
    %69 = arith.addf %66, %68 : vector<2x256xf32>
    %70 = vector.broadcast %8 : vector<1x256xf32> to vector<2x256xf32>
    %71 = arith.mulf %69, %70 : vector<2x256xf32>
    %72 = math.tanh %71 : vector<2x256xf32>
    %73 = vector.broadcast %8 : vector<1x256xf32> to vector<2x256xf32>
    %74 = arith.mulf %72, %73 : vector<2x256xf32>
    %75 = vector.broadcast %10 : vector<1x256xf32> to vector<2x256xf32>
    %76 = arith.addf %74, %75 : vector<2x256xf32>
    %77 = vector.extract_strided_slice %76 {offsets = [0, 0], sizes = [2, 64], strides = [1, 1]} : vector<2x256xf32> to vector<2x64xf32>
    %78 = vector.extract_strided_slice %76 {offsets = [0, 64], sizes = [2, 64], strides = [1, 1]} : vector<2x256xf32> to vector<2x64xf32>
    %79 = vector.extract_strided_slice %76 {offsets = [0, 128], sizes = [2, 64], strides = [1, 1]} : vector<2x256xf32> to vector<2x64xf32>
    %80 = vector.extract_strided_slice %76 {offsets = [0, 192], sizes = [2, 64], strides = [1, 1]} : vector<2x256xf32> to vector<2x64xf32>
    %81 = arith.mulf %78, %59 : vector<2x64xf32>
    %82 = arith.mulf %77, %79 : vector<2x64xf32>
    %83 = arith.addf %81, %82 : vector<2x64xf32>
    %84 = math.tanh %83 : vector<2x64xf32>
    %85 = arith.mulf %80, %84 : vector<2x64xf32>
    %86 = vector.extract_strided_slice %7 {offsets = [0, 3, 0], sizes = [2, 1, 256], strides = [1, 1, 1]} : vector<2x8x512xf32> to vector<2x1x256xf32>
    %87 = vector.shape_cast %86 : vector<2x1x256xf32> to vector<2x256xf32>
    %88 = vector.extract_strided_slice %7 {offsets = [0, 4, 256], sizes = [2, 1, 256], strides = [1, 1, 1]} : vector<2x8x512xf32> to vector<2x1x256xf32>
    %89 = vector.shape_cast %88 : vector<2x1x256xf32> to vector<2x256xf32>
    %90 = arith.addf %87, %89 : vector<2x256xf32>
    %91 = arith.truncf %85 : vector<2x64xf32> to vector<2x64xbf16>
    %cst_16 = arith.constant dense<0.000000e+00> : vector<2x256xf32>
    %92 = tpu.matmul %91, %11, %cst_16 {dimension_numbers = #tpu.dot_dimension_numbers<[1], [0], [0], [1], [0, 0, 1, 1], [], []>} : vector<2x64xbf16>, vector<64x256xbf16>, vector<2x256xf32> -> vector<2x256xf32>
    %93 = arith.addf %90, %92 : vector<2x256xf32>
    %94 = vector.broadcast %8 : vector<1x256xf32> to vector<2x256xf32>
    %95 = arith.mulf %93, %94 : vector<2x256xf32>
    %96 = math.tanh %95 : vector<2x256xf32>
    %97 = vector.broadcast %8 : vector<1x256xf32> to vector<2x256xf32>
    %98 = arith.mulf %96, %97 : vector<2x256xf32>
    %99 = vector.broadcast %10 : vector<1x256xf32> to vector<2x256xf32>
    %100 = arith.addf %98, %99 : vector<2x256xf32>
    %101 = vector.extract_strided_slice %100 {offsets = [0, 0], sizes = [2, 64], strides = [1, 1]} : vector<2x256xf32> to vector<2x64xf32>
    %102 = vector.extract_strided_slice %100 {offsets = [0, 64], sizes = [2, 64], strides = [1, 1]} : vector<2x256xf32> to vector<2x64xf32>
    %103 = vector.extract_strided_slice %100 {offsets = [0, 128], sizes = [2, 64], strides = [1, 1]} : vector<2x256xf32> to vector<2x64xf32>
    %104 = vector.extract_strided_slice %100 {offsets = [0, 192], sizes = [2, 64], strides = [1, 1]} : vector<2x256xf32> to vector<2x64xf32>
    %105 = arith.mulf %102, %83 : vector<2x64xf32>
    %106 = arith.mulf %101, %103 : vector<2x64xf32>
    %107 = arith.addf %105, %106 : vector<2x64xf32>
    %108 = math.tanh %107 : vector<2x64xf32>
    %109 = arith.mulf %104, %108 : vector<2x64xf32>
    %110 = vector.extract_strided_slice %7 {offsets = [0, 4, 0], sizes = [2, 1, 256], strides = [1, 1, 1]} : vector<2x8x512xf32> to vector<2x1x256xf32>
    %111 = vector.shape_cast %110 : vector<2x1x256xf32> to vector<2x256xf32>
    %112 = vector.extract_strided_slice %7 {offsets = [0, 3, 256], sizes = [2, 1, 256], strides = [1, 1, 1]} : vector<2x8x512xf32> to vector<2x1x256xf32>
    %113 = vector.shape_cast %112 : vector<2x1x256xf32> to vector<2x256xf32>
    %114 = arith.addf %111, %113 : vector<2x256xf32>
    %115 = arith.truncf %109 : vector<2x64xf32> to vector<2x64xbf16>
    %cst_17 = arith.constant dense<0.000000e+00> : vector<2x256xf32>
    %116 = tpu.matmul %115, %11, %cst_17 {dimension_numbers = #tpu.dot_dimension_numbers<[1], [0], [0], [1], [0, 0, 1, 1], [], []>} : vector<2x64xbf16>, vector<64x256xbf16>, vector<2x256xf32> -> vector<2x256xf32>
    %117 = arith.addf %114, %116 : vector<2x256xf32>
    %118 = vector.broadcast %8 : vector<1x256xf32> to vector<2x256xf32>
    %119 = arith.mulf %117, %118 : vector<2x256xf32>
    %120 = math.tanh %119 : vector<2x256xf32>
    %121 = vector.broadcast %8 : vector<1x256xf32> to vector<2x256xf32>
    %122 = arith.mulf %120, %121 : vector<2x256xf32>
    %123 = vector.broadcast %10 : vector<1x256xf32> to vector<2x256xf32>
    %124 = arith.addf %122, %123 : vector<2x256xf32>
    %125 = vector.extract_strided_slice %124 {offsets = [0, 0], sizes = [2, 64], strides = [1, 1]} : vector<2x256xf32> to vector<2x64xf32>
    %126 = vector.extract_strided_slice %124 {offsets = [0, 64], sizes = [2, 64], strides = [1, 1]} : vector<2x256xf32> to vector<2x64xf32>
    %127 = vector.extract_strided_slice %124 {offsets = [0, 128], sizes = [2, 64], strides = [1, 1]} : vector<2x256xf32> to vector<2x64xf32>
    %128 = vector.extract_strided_slice %124 {offsets = [0, 192], sizes = [2, 64], strides = [1, 1]} : vector<2x256xf32> to vector<2x64xf32>
    %129 = arith.mulf %126, %107 : vector<2x64xf32>
    %130 = arith.mulf %125, %127 : vector<2x64xf32>
    %131 = arith.addf %129, %130 : vector<2x64xf32>
    %132 = math.tanh %131 : vector<2x64xf32>
    %133 = arith.mulf %128, %132 : vector<2x64xf32>
    %134 = vector.extract_strided_slice %7 {offsets = [0, 5, 0], sizes = [2, 1, 256], strides = [1, 1, 1]} : vector<2x8x512xf32> to vector<2x1x256xf32>
    %135 = vector.shape_cast %134 : vector<2x1x256xf32> to vector<2x256xf32>
    %136 = vector.extract_strided_slice %7 {offsets = [0, 2, 256], sizes = [2, 1, 256], strides = [1, 1, 1]} : vector<2x8x512xf32> to vector<2x1x256xf32>
    %137 = vector.shape_cast %136 : vector<2x1x256xf32> to vector<2x256xf32>
    %138 = arith.addf %135, %137 : vector<2x256xf32>
    %139 = arith.truncf %133 : vector<2x64xf32> to vector<2x64xbf16>
    %cst_18 = arith.constant dense<0.000000e+00> : vector<2x256xf32>
    %140 = tpu.matmul %139, %11, %cst_18 {dimension_numbers = #tpu.dot_dimension_numbers<[1], [0], [0], [1], [0, 0, 1, 1], [], []>} : vector<2x64xbf16>, vector<64x256xbf16>, vector<2x256xf32> -> vector<2x256xf32>
    %141 = arith.addf %138, %140 : vector<2x256xf32>
    %142 = vector.broadcast %8 : vector<1x256xf32> to vector<2x256xf32>
    %143 = arith.mulf %141, %142 : vector<2x256xf32>
    %144 = math.tanh %143 : vector<2x256xf32>
    %145 = vector.broadcast %8 : vector<1x256xf32> to vector<2x256xf32>
    %146 = arith.mulf %144, %145 : vector<2x256xf32>
    %147 = vector.broadcast %10 : vector<1x256xf32> to vector<2x256xf32>
    %148 = arith.addf %146, %147 : vector<2x256xf32>
    %149 = vector.extract_strided_slice %148 {offsets = [0, 0], sizes = [2, 64], strides = [1, 1]} : vector<2x256xf32> to vector<2x64xf32>
    %150 = vector.extract_strided_slice %148 {offsets = [0, 64], sizes = [2, 64], strides = [1, 1]} : vector<2x256xf32> to vector<2x64xf32>
    %151 = vector.extract_strided_slice %148 {offsets = [0, 128], sizes = [2, 64], strides = [1, 1]} : vector<2x256xf32> to vector<2x64xf32>
    %152 = vector.extract_strided_slice %148 {offsets = [0, 192], sizes = [2, 64], strides = [1, 1]} : vector<2x256xf32> to vector<2x64xf32>
    %153 = arith.mulf %150, %131 : vector<2x64xf32>
    %154 = arith.mulf %149, %151 : vector<2x64xf32>
    %155 = arith.addf %153, %154 : vector<2x64xf32>
    %156 = math.tanh %155 : vector<2x64xf32>
    %157 = arith.mulf %152, %156 : vector<2x64xf32>
    %158 = vector.extract_strided_slice %7 {offsets = [0, 6, 0], sizes = [2, 1, 256], strides = [1, 1, 1]} : vector<2x8x512xf32> to vector<2x1x256xf32>
    %159 = vector.shape_cast %158 : vector<2x1x256xf32> to vector<2x256xf32>
    %160 = vector.extract_strided_slice %7 {offsets = [0, 1, 256], sizes = [2, 1, 256], strides = [1, 1, 1]} : vector<2x8x512xf32> to vector<2x1x256xf32>
    %161 = vector.shape_cast %160 : vector<2x1x256xf32> to vector<2x256xf32>
    %162 = arith.addf %159, %161 : vector<2x256xf32>
    %163 = arith.truncf %157 : vector<2x64xf32> to vector<2x64xbf16>
    %cst_19 = arith.constant dense<0.000000e+00> : vector<2x256xf32>
    %164 = tpu.matmul %163, %11, %cst_19 {dimension_numbers = #tpu.dot_dimension_numbers<[1], [0], [0], [1], [0, 0, 1, 1], [], []>} : vector<2x64xbf16>, vector<64x256xbf16>, vector<2x256xf32> -> vector<2x256xf32>
    %165 = arith.addf %162, %164 : vector<2x256xf32>
    %166 = vector.broadcast %8 : vector<1x256xf32> to vector<2x256xf32>
    %167 = arith.mulf %165, %166 : vector<2x256xf32>
    %168 = math.tanh %167 : vector<2x256xf32>
    %169 = vector.broadcast %8 : vector<1x256xf32> to vector<2x256xf32>
    %170 = arith.mulf %168, %169 : vector<2x256xf32>
    %171 = vector.broadcast %10 : vector<1x256xf32> to vector<2x256xf32>
    %172 = arith.addf %170, %171 : vector<2x256xf32>
    %173 = vector.extract_strided_slice %172 {offsets = [0, 0], sizes = [2, 64], strides = [1, 1]} : vector<2x256xf32> to vector<2x64xf32>
    %174 = vector.extract_strided_slice %172 {offsets = [0, 64], sizes = [2, 64], strides = [1, 1]} : vector<2x256xf32> to vector<2x64xf32>
    %175 = vector.extract_strided_slice %172 {offsets = [0, 128], sizes = [2, 64], strides = [1, 1]} : vector<2x256xf32> to vector<2x64xf32>
    %176 = vector.extract_strided_slice %172 {offsets = [0, 192], sizes = [2, 64], strides = [1, 1]} : vector<2x256xf32> to vector<2x64xf32>
    %177 = arith.mulf %174, %155 : vector<2x64xf32>
    %178 = arith.mulf %173, %175 : vector<2x64xf32>
    %179 = arith.addf %177, %178 : vector<2x64xf32>
    %180 = math.tanh %179 : vector<2x64xf32>
    %181 = arith.mulf %176, %180 : vector<2x64xf32>
    %182 = vector.extract_strided_slice %7 {offsets = [0, 7, 0], sizes = [2, 1, 256], strides = [1, 1, 1]} : vector<2x8x512xf32> to vector<2x1x256xf32>
    %183 = vector.shape_cast %182 : vector<2x1x256xf32> to vector<2x256xf32>
    %184 = vector.extract_strided_slice %7 {offsets = [0, 0, 256], sizes = [2, 1, 256], strides = [1, 1, 1]} : vector<2x8x512xf32> to vector<2x1x256xf32>
    %185 = vector.shape_cast %184 : vector<2x1x256xf32> to vector<2x256xf32>
    %186 = arith.addf %183, %185 : vector<2x256xf32>
    %187 = arith.truncf %181 : vector<2x64xf32> to vector<2x64xbf16>
    %cst_20 = arith.constant dense<0.000000e+00> : vector<2x256xf32>
    %188 = tpu.matmul %187, %11, %cst_20 {dimension_numbers = #tpu.dot_dimension_numbers<[1], [0], [0], [1], [0, 0, 1, 1], [], []>} : vector<2x64xbf16>, vector<64x256xbf16>, vector<2x256xf32> -> vector<2x256xf32>
    %189 = arith.addf %186, %188 : vector<2x256xf32>
    %190 = vector.broadcast %8 : vector<1x256xf32> to vector<2x256xf32>
    %191 = arith.mulf %189, %190 : vector<2x256xf32>
    %192 = math.tanh %191 : vector<2x256xf32>
    %193 = vector.broadcast %8 : vector<1x256xf32> to vector<2x256xf32>
    %194 = arith.mulf %192, %193 : vector<2x256xf32>
    %195 = vector.broadcast %10 : vector<1x256xf32> to vector<2x256xf32>
    %196 = arith.addf %194, %195 : vector<2x256xf32>
    %197 = vector.extract_strided_slice %196 {offsets = [0, 0], sizes = [2, 64], strides = [1, 1]} : vector<2x256xf32> to vector<2x64xf32>
    %198 = vector.extract_strided_slice %196 {offsets = [0, 64], sizes = [2, 64], strides = [1, 1]} : vector<2x256xf32> to vector<2x64xf32>
    %199 = vector.extract_strided_slice %196 {offsets = [0, 128], sizes = [2, 64], strides = [1, 1]} : vector<2x256xf32> to vector<2x64xf32>
    %200 = vector.extract_strided_slice %196 {offsets = [0, 192], sizes = [2, 64], strides = [1, 1]} : vector<2x256xf32> to vector<2x64xf32>
    %201 = arith.mulf %198, %179 : vector<2x64xf32>
    %202 = arith.mulf %197, %199 : vector<2x64xf32>
    %203 = arith.addf %201, %202 : vector<2x64xf32>
    %204 = math.tanh %203 : vector<2x64xf32>
    %205 = arith.mulf %200, %204 : vector<2x64xf32>
    %206 = tpu.concatenate %205, %203 in 1 : vector<2x64xf32>, vector<2x64xf32> -> vector<2x128xf32>
    %207 = arith.truncf %206 : vector<2x128xf32> to vector<2x128xbf16>
    %c0_21 = arith.constant 0 : index
    %c0_22 = arith.constant 0 : index
    %208 = vector.load %arg5[%c0_21, %c0_22] : memref<128x4xbf16, #tpu.memory_space<vmem>>, vector<128x4xbf16>
    %cst_23 = arith.constant dense<0.000000e+00> : vector<2x4xf32>
    %209 = tpu.matmul %207, %208, %cst_23 {dimension_numbers = #tpu.dot_dimension_numbers<[1], [0], [0], [1], [0, 0, 1, 1], [], []>} : vector<2x128xbf16>, vector<128x4xbf16>, vector<2x4xf32> -> vector<2x4xf32>
    %c0_24 = arith.constant 0 : index
    %c0_25 = arith.constant 0 : index
    %210 = vector.load %arg6[%c0_24, %c0_25] : memref<1x4xf32, #tpu.memory_space<vmem>>, vector<1x4xf32>
    %211 = vector.broadcast %210 : vector<1x4xf32> to vector<2x4xf32>
    %212 = arith.addf %209, %211 : vector<2x4xf32>
    %213 = arith.negf %212 : vector<2x4xf32>
    %214 = math.exp %213 : vector<2x4xf32>
    %cst_26 = arith.constant 1.000000e+00 : f32
    %215 = vector.broadcast %cst_26 : f32 to vector<2x4xf32>
    %216 = arith.addf %215, %214 : vector<2x4xf32>
    %217 = arith.divf %215, %216 : vector<2x4xf32>
    %c0_27 = arith.constant 0 : index
    %c0_28 = arith.constant 0 : index
    %218 = vector.load %arg7[%c0_27, %c0_28] : memref<2x4xf32, #tpu.memory_space<vmem>>, vector<2x4xf32>
    tpu.vector_store %arg7[%c0_27, %c0_28], %217 {strides = array<i32>} : memref<2x4xf32, #tpu.memory_space<vmem>>, vector<2x4xf32>,
    return
  }
}

</mosaic_0001>

<llo_original>
// kernel: words_rnn_forward.1
$region0: #{words_rnn_forward.1}
  #allocation0 [shape = 'u32[]', space=smem, size = 0x4, offset = 0x4, fixed_abs, tag = 'smem constant byte address 0x4 - core index']
  #allocation1 [shape = 'u32[144,128]{1,0:T(1,128)}', space=vmem, size = 0x12000, scoped, tag = 'internal scratch']
  %s0 = inlined_call_operand.vmem [shape: f32[2,8,16], index: 0, kind: input, shape index: {}]
  %s1 = inlined_call_operand.vmem [shape: f32[16,512], index: 1, kind: input, shape index: {}]
  %s2 = inlined_call_operand.vmem [shape: f32[1,512], index: 2, kind: input, shape index: {}]
  %s3 = inlined_call_operand.vmem [shape: f32[1,256], index: 3, kind: input, shape index: {}]
  %s4 = inlined_call_operand.hbm [shape: bf16[64,256], index: 4, kind: input, shape index: {}]
  %s5 = inlined_call_operand.vmem [shape: bf16[128,4], index: 5, kind: input, shape index: {}]
  %s6 = inlined_call_operand.vmem [shape: f32[1,4], index: 6, kind: input, shape index: {}]
  %s7 = inlined_call_operand.hbm [shape: f32[2,4], index: 7, kind: output, shape index: {}]
  %s8 = sld [smem:[#allocation0]]
  $region42: #{words_rnn_forward.1} parent=0
    _
  %s10 = ssub.s32 1, %s8
  %s11 = scalar_select 0, %s10, %s8
  $region1: #{words_rnn_forward.1} parent=0
    #allocation2 [shape = 'u8[32768]{0}', space=vmem, size = 0x8000, scoped, tag = 'input window, operand 4, single buffered']
    #allocation3 [shape = 's32[1]{0}', space=sflag, size = 0x4, scoped, tag = 'scoped memory for words_rnn_forward.1']
    #allocation4 [shape = 's32[1]{0}', space=sflag, size = 0x4, scoped, tag = 'scoped memory for words_rnn_forward.1']
    #allocation5 [shape = 'u8[1024]{0}', space=vmem, size = 0x400, scoped, tag = 'output window, operand 0, single buffered']
    %12 = vsyncpa [#allocation3], 0
    %13 = vsyncpa [#allocation4], 0
    // Predicated region
    $region2: #{words_rnn_forward.1} parent=1 // pred_check
      _
    $region3: #{words_rnn_forward.1} parent=1 // pred_check_branch
      %15 = sbr.rel (0) target = $region5
    $region4: #{words_rnn_forward.1} parent=1 // pred_region
      _
    $region5: #{words_rnn_forward.1} parent=1 // pred_fallthru
      _
    // Predicated region
    $region6: #{words_rnn_forward.1} parent=1 // pred_check
      _
    $region7: #{words_rnn_forward.1} parent=1 // pred_check_branch
      %17 = sbr.rel (0) target = $region9
    $region8: #{words_rnn_forward.1} parent=1 // pred_region
      _
    $region9: #{words_rnn_forward.1} parent=1 // pred_fallthru
      _
    // Predicated region
    $region10: #{words_rnn_forward.1} parent=1 // pred_check
      _
    $region11: #{words_rnn_forward.1} parent=1 // pred_check_branch
      %19 = sbr.rel (0) target = $region13
    $region12: #{words_rnn_forward.1} parent=1 // pred_region
      _
    $region13: #{words_rnn_forward.1} parent=1 // pred_fallthru
      _
    // Predicated region
    $region14: #{words_rnn_forward.1} parent=1 // pred_check
      _
    $region15: #{words_rnn_forward.1} parent=1 // pred_check_branch
      %21 = sbr.rel (0) target = $region17
    $region16: #{words_rnn_forward.1} parent=1 // pred_region
      _
    $region17: #{words_rnn_forward.1} parent=1 // pred_fallthru
      _
    // Predicated region
    $region18: #{words_rnn_forward.1} parent=1 // pred_check
      _
    $region19: #{words_rnn_forward.1} parent=1 // pred_check_branch
      %23 = sbr.rel (0) target = $region21
    $region20: #{words_rnn_forward.1} parent=1 // pred_region
      %s25 = ssub.s32 1024, 1024
      %26 = vsyncadd [#allocation3], %s25
      %s27 = sshll.u32 [#allocation2], 4
      %s28 = int_to_ptr.vmem [resolvable:$true] %s27
      %33 = dma.hbm_to_vmem [thread:$0]  %s4, 1024, %s28, [#allocation3], 128, 128, 8
    $region21: #{words_rnn_forward.1} parent=1 // pred_fallthru
      _
    // Predicated region
    $region22: #{words_rnn_forward.1} parent=1 // pred_check
      _
    $region23: #{words_rnn_forward.1} parent=1 // pred_check_branch
      %35 = sbr.rel (0) target = $region25
    $region24: #{words_rnn_forward.1} parent=1 // pred_region
      _
    $region25: #{words_rnn_forward.1} parent=1 // pred_fallthru
      _
    // Predicated region
    $region26: #{words_rnn_forward.1} parent=1 // pred_check
      _
    $region27: #{words_rnn_forward.1} parent=1 // pred_check_branch
      %37 = sbr.rel (0) target = $region29
    $region28: #{words_rnn_forward.1} parent=1 // pred_region
      _
    $region29: #{words_rnn_forward.1} parent=1 // pred_fallthru
      _
    // Predicated region
    $region30: #{words_rnn_forward.1} parent=1 // pred_check
      _
    $region31: #{words_rnn_forward.1} parent=1 // pred_check_branch
      %39 = sbr.rel (0) target = $region33
    $region32: #{words_rnn_forward.1} parent=1 // pred_region
      %40 = dma.done [#allocation3], 1024
    $region33: #{words_rnn_forward.1} parent=1 // pred_fallthru
      _
    %v42 = vld [vmem:[%s0] sm:$0xff]
    %v43 = vld [vmem:[%s0 + $0x8] sm:$0xff]
    %v44 = vld [vmem:[%s1] sm:$0xff]
    %v45 = vld [vmem:[%s1 + $0x8] sm:$0xff]
    %v46 = vld [vmem:[%s1 + $0x10] sm:$0xff]
    %v47 = vld [vmem:[%s1 + $0x18] sm:$0xff]
    %v48 = vld [vmem:[%s1 + $0x20] sm:$0xff]
    %v49 = vld [vmem:[%s1 + $0x28] sm:$0xff]
    %v50 = vld [vmem:[%s1 + $0x30] sm:$0xff]
    %v51 = vld [vmem:[%s1 + $0x38] sm:$0xff]
    %v52 = vld [vmem:[%s2] sm:$0xf]
    %v54 = vlaneseq
    %v55 = vshrl.u32 %v54, 7
    %v56 = vsub.s32 0, %v55
    %v57 = vrot.slane %v52, %v56
    %v58 = vlaneseq
    %v59 = vshrl.u32 %v58, 7
    %v60 = vsub.s32 1, %v59
    %v61 = vrot.slane %v52, %v60
    %v62 = vlaneseq
    %v63 = vshrl.u32 %v62, 7
    %v64 = vsub.s32 2, %v63
    %v65 = vrot.slane %v52, %v64
    %v66 = vlaneseq
    %v67 = vshrl.u32 %v66, 7
    %v68 = vsub.s32 3, %v67
    %v69 = vrot.slane %v52, %v68
    %vm74 = vcmask 130048
    %v76 = vsel %vm74, %v42, 0
    %v79 = vsel %vm74, %v43, 0
    %81 = vmatprep.subr.mxu0 %v45
    %82 = vmatpush1.msra.mxu0 %v44
    %83 = vmatprep.subr.mxu0 %v49
    %84 = vmatpush1.msra.mxu0 %v48
    %85 = vmatprep.subr.mxu0 0.0
    %86 = vmatpush1.msra.mxu0 0.0
    %87 = vmatprep.subr.mxu0 0.0
    %88 = vmatpush1.msra.mxu0 0.0
    %89 = vmatprep.subr.mxu0 0.0
    %90 = vmatpush1.msra.mxu0 0.0
    %91 = vmatprep.subr.mxu0 0.0
    %92 = vmatpush1.msra.mxu0 0.0
    %93 = vmatprep.subr.mxu0 0.0
    %94 = vmatpush1.msra.mxu0 0.0
    %95 = vmatprep.subr.mxu0 0.0
    %96 = vmatpush1.msra.mxu0 0.0
    %97 = vmatprep.subr.mxu0 0.0
    %98 = vmatpush1.msra.mxu0 0.0
    %99 = vmatprep.subr.mxu0 0.0
    %100 = vmatpush1.msra.mxu0 0.0
    %101 = vmatprep.subr.mxu0 0.0
    %102 = vmatpush1.msra.mxu0 0.0
    %103 = vmatprep.subr.mxu0 0.0
    %104 = vmatpush1.msra.mxu0 0.0
    %105 = vmatprep.subr.mxu0 0.0
    %106 = vmatpush1.msra.mxu0 0.0
    %107 = vmatprep.subr.mxu0 0.0
    %108 = vmatpush1.msra.mxu0 0.0
    %109 = vmatprep.subr.mxu0 0.0
    %110 = vmatpush1.msra.mxu0 0.0
    %111 = vmatprep.subr.mxu0 0.0
    %112 = vmatpush1.msra.mxu0 0.0
    %113 = vmatprep.subr.mxu0 0.0
    %114 = vmatpush1.msra.mxu0 0.0
    %115 = vmatprep.subr.mxu0 0.0
    %116 = vmatpush1.msra.mxu0 0.0
    %117 = vmatprep.subr.mxu0 0.0
    %118 = vmatpush1.msra.mxu0 0.0
    %119 = vmatprep.subr.mxu0 0.0
    %120 = vmatpush1.msra.mxu0 0.0
    %121 = vmatprep.subr.mxu0 0.0
    %122 = vmatpush1.msra.mxu0 0.0
    %123 = vmatprep.subr.mxu0 0.0
    %124 = vmatpush1.msra.mxu0 0.0
    %125 = vmatprep.subr.mxu0 0.0
    %126 = vmatpush1.msra.mxu0 0.0
    %127 = vmatprep.subr.mxu0 0.0
    %128 = vmatpush1.msra.mxu0 0.0
    %129 = vmatprep.subr.mxu0 0.0
    %130 = vmatpush1.msra.mxu0 0.0
    %131 = vmatprep.subr.mxu0 0.0
    %132 = vmatpush1.msra.mxu0 0.0
    %133 = vmatprep.subr.mxu0 0.0
    %134 = vmatpush1.msra.mxu0 0.0
    %135 = vmatprep.subr.mxu0 0.0
    %136 = vmatpush1.msra.mxu0 0.0
    %137 = vmatprep.subr.mxu0 0.0
    %138 = vmatpush1.msra.mxu0 0.0
    %139 = vmatprep.subr.mxu0 0.0
    %140 = vmatpush1.msra.mxu0 0.0
    %141 = vmatprep.subr.mxu0 0.0
    %142 = vmatpush1.msra.mxu0 0.0
    %143 = vmatprep.subr.mxu0 0.0
    %144 = vmatpush1.msra.mxu0 0.0
    %145 = vmatprep.mubr.f32.mxu0 0.0
    %146 = vmatmul.mubr.f32.gmra.mrb[0].mxu0 %v76
    %v147 = vpop.f32.mrb[0].mxu0
    %v148 = vadd.f32 %v57, %v147
    %v149 = vpop.f32.mrb[0].mxu0
    %v150 = vadd.f32 %v61, %v149
    %151 = vmatprep.mubr.f32.mxu0 0.0
    %152 = vmatmul.mubr.f32.gmra.mrb[0].mxu0 %v79
    %v153 = vpop.f32.mrb[0].mxu0
    %v154 = vadd.f32 %v57, %v153
    %v155 = vpop.f32.mrb[0].mxu0
    %v156 = vadd.f32 %v61, %v155
    %157 = vdwg.mxu0
    %158 = vmatprep.subr.mxu0 %v47
    %159 = vmatpush1.msra.mxu0 %v46
    %160 = vmatprep.subr.mxu0 %v51
    %161 = vmatpush1.msra.mxu0 %v50
    %162 = vmatprep.subr.mxu0 0.0
    %163 = vmatpush1.msra.mxu0 0.0
    %164 = vmatprep.subr.mxu0 0.0
    %165 = vmatpush1.msra.mxu0 0.0
    %166 = vmatprep.subr.mxu0 0.0
    %167 = vmatpush1.msra.mxu0 0.0
    %168 = vmatprep.subr.mxu0 0.0
    %169 = vmatpush1.msra.mxu0 0.0
    %170 = vmatprep.subr.mxu0 0.0
    %171 = vmatpush1.msra.mxu0 0.0
    %172 = vmatprep.subr.mxu0 0.0
    %173 = vmatpush1.msra.mxu0 0.0
    %174 = vmatprep.subr.mxu0 0.0
    %175 = vmatpush1.msra.mxu0 0.0
    %176 = vmatprep.subr.mxu0 0.0
    %177 = vmatpush1.msra.mxu0 0.0
    %178 = vmatprep.subr.mxu0 0.0
    %179 = vmatpush1.msra.mxu0 0.0
    %180 = vmatprep.subr.mxu0 0.0
    %181 = vmatpush1.msra.mxu0 0.0
    %182 = vmatprep.subr.mxu0 0.0
    %183 = vmatpush1.msra.mxu0 0.0
    %184 = vmatprep.subr.mxu0 0.0
    %185 = vmatpush1.msra.mxu0 0.0
    %186 = vmatprep.subr.mxu0 0.0
    %187 = vmatpush1.msra.mxu0 0.0
    %188 = vmatprep.subr.mxu0 0.0
    %189 = vmatpush1.msra.mxu0 0.0
    %190 = vmatprep.subr.mxu0 0.0
    %191 = vmatpush1.msra.mxu0 0.0
    %192 = vmatprep.subr.mxu0 0.0
    %193 = vmatpush1.msra.mxu0 0.0
    %194 = vmatprep.subr.mxu0 0.0
    %195 = vmatpush1.msra.mxu0 0.0
    %196 = vmatprep.subr.mxu0 0.0
    %197 = vmatpush1.msra.mxu0 0.0
    %198 = vmatprep.subr.mxu0 0.0
    %199 = vmatpush1.msra.mxu0 0.0
    %200 = vmatprep.subr.mxu0 0.0
    %201 = vmatpush1.msra.mxu0 0.0
    %202 = vmatprep.subr.mxu0 0.0
    %203 = vmatpush1.msra.mxu0 0.0
    %204 = vmatprep.subr.mxu0 0.0
    %205 = vmatpush1.msra.mxu0 0.0
    %206 = vmatprep.subr.mxu0 0.0
    %207 = vmatpush1.msra.mxu0 0.0
    %208 = vmatprep.subr.mxu0 0.0
    %209 = vmatpush1.msra.mxu0 0.0
    %210 = vmatprep.subr.mxu0 0.0
    %211 = vmatpush1.msra.mxu0 0.0
    %212 = vmatprep.subr.mxu0 0.0
    %213 = vmatpush1.msra.mxu0 0.0
    %214 = vmatprep.subr.mxu0 0.0
    %215 = vmatpush1.msra.mxu0 0.0
    %216 = vmatprep.subr.mxu0 0.0
    %217 = vmatpush1.msra.mxu0 0.0
    %218 = vmatprep.subr.mxu0 0.0
    %219 = vmatpush1.msra.mxu0 0.0
    %220 = vmatprep.subr.mxu0 0.0
    %221 = vmatpush1.msra.mxu0 0.0
    %222 = vmatprep.mubr.f32.mxu0 0.0
    %223 = vmatmul.mubr.f32.gmra.mrb[0].mxu0 %v76
    %v224 = vpop.f32.mrb[0].mxu0
    %v225 = vadd.f32 %v65, %v224
    %v226 = vpop.f32.mrb[0].mxu0
    %v227 = vadd.f32 %v69, %v226
    %228 = vmatprep.mubr.f32.mxu0 0.0
    %229 = vmatmul.mubr.f32.gmra.mrb[0].mxu0 %v79
    %v230 = vpop.f32.mrb[0].mxu0
    %v231 = vadd.f32 %v65, %v230
    %v232 = vpop.f32.mrb[0].mxu0
    %v233 = vadd.f32 %v69, %v232
    %234 = vdwg.mxu0
    %v235 = vld [vmem:[%s3] sm:$0x3]
    %v236 = vsub.f32 1.0, %v235
    %v237 = vld [vmem:[#allocation2] sm:$0xff]
    %v238 = vld [vmem:[#allocation2 + $0x8] sm:$0xff]
    %v239 = vld [vmem:[#allocation2 + $0x10] sm:$0xff]
    %v240 = vld [vmem:[#allocation2 + $0x18] sm:$0xff]
    %v241 = vld [vmem:[#allocation2 + $0x20] sm:$0xff]
    %v242 = vld [vmem:[#allocation2 + $0x28] sm:$0xff]
    %v243 = vld [vmem:[#allocation2 + $0x30] sm:$0xff]
    %v244 = vld [vmem:[#allocation2 + $0x38] sm:$0xff]
    %v249 = vrot.slane %v225, 7
    %v250 = vrot.slane %v227, 7
    %v251 = vrot.slane %v231, 7
    %v252 = vrot.slane %v233, 7
    %v257 = vadd.f32 %v148, %v249
    %v258 = vadd.f32 %v150, %v250
    %v259 = vadd.f32 %v154, %v251
    %v260 = vadd.f32 %v156, %v252
    %v269 = vunpack.c.l.b16 %v237
    %v270 = vunpack.c.h.b16 %v237
    %v271 = vunpack.c.l.b16 %v238
    %v272 = vunpack.c.h.b16 %v238
    %v273 = vunpack.c.l.b16 %v239
    %v274 = vunpack.c.h.b16 %v239
    %v275 = vunpack.c.l.b16 %v240
    %v276 = vunpack.c.h.b16 %v240
    %v277 = vunpack.c.l.b16 %v241
    %v278 = vunpack.c.h.b16 %v241
    %v279 = vunpack.c.l.b16 %v242
    %v280 = vunpack.c.h.b16 %v242
    %v281 = vunpack.c.l.b16 %v243
    %v282 = vunpack.c.h.b16 %v243
    %v283 = vunpack.c.l.b16 %v244
    %v284 = vunpack.c.h.b16 %v244
    %v285 = vpack.c.b16 %v271, %v269
    %v286 = vpack.c.b16 %v272, %v270
    %v287 = vpack.c.b16 %v275, %v273
    %v288 = vpack.c.b16 %v276, %v274
    %v289 = vpack.c.b16 %v279, %v277
    %v290 = vpack.c.b16 %v280, %v278
    %v291 = vpack.c.b16 %v283, %v281
    %v292 = vpack.c.b16 %v284, %v282
    %vm301 = vcmask 523264
    %v303 = vsel %vm301, 0, 0
    %305 = vmatprep.subr.bf16.mxu0 %v286
    %306 = vmatpush1.bf16.msra.mxu0 %v285
    %307 = vmatprep.subr.bf16.mxu0 %v288
    %308 = vmatpush1.bf16.msra.mxu0 %v287
    %309 = vmatprep.subr.bf16.mxu0 %v290
    %310 = vmatpush1.bf16.msra.mxu0 %v289
    %311 = vmatprep.subr.bf16.mxu0 %v292
    %312 = vmatpush1.bf16.msra.mxu0 %v291
    %313 = vmatprep.subr.bf16.mxu0 0
    %314 = vmatpush1.bf16.msra.mxu0 0
    %315 = vmatprep.subr.bf16.mxu0 0
    %316 = vmatpush1.bf16.msra.mxu0 0
    %317 = vmatprep.subr.bf16.mxu0 0
    %318 = vmatpush1.bf16.msra.mxu0 0
    %319 = vmatprep.subr.bf16.mxu0 0
    %320 = vmatpush1.bf16.msra.mxu0 0
    %321 = vmatprep.subr.bf16.mxu0 0
    %322 = vmatpush1.bf16.msra.mxu0 0
    %323 = vmatprep.subr.bf16.mxu0 0
    %324 = vmatpush1.bf16.msra.mxu0 0
    %325 = vmatprep.subr.bf16.mxu0 0
    %326 = vmatpush1.bf16.msra.mxu0 0
    %327 = vmatprep.subr.bf16.mxu0 0
    %328 = vmatpush1.bf16.msra.mxu0 0
    %329 = vmatprep.subr.bf16.mxu0 0
    %330 = vmatpush1.bf16.msra.mxu0 0
    %331 = vmatprep.subr.bf16.mxu0 0
    %332 = vmatpush1.bf16.msra.mxu0 0
    %333 = vmatprep.subr.bf16.mxu0 0
    %334 = vmatpush1.bf16.msra.mxu0 0
    %335 = vmatprep.subr.bf16.mxu0 0
    %336 = vmatpush1.bf16.msra.mxu0 0
    %337 = vmatprep.mubr.bf16.mxu0 0
    %338 = vmatmul.mubr.bf16.gmra.mrb[0].mxu0 %v303
    %v339 = vpop.f32.mrb[0].mxu0
    %v340 = vadd.f32 0.0, %v339
    %v341 = vpop.f32.mrb[0].mxu0
    %v342 = vadd.f32 0.0, %v341
    %v343 = vpop.f32.mrb[0].mxu0
    %v344 = vpop.f32.mrb[0].mxu0
    %345 = vdwg.mxu0
    %v348 = vrot.slane %v340, 1
    %v349 = vrot.slane %v342, 1
    %v354 = vadd.f32 %v257, %v340
    %v355 = vadd.f32 %v258, %v342
    %v356 = vadd.f32 %v259, %v348
    %v357 = vadd.f32 %v260, %v349
    %v359 = vlaneseq
    %v360 = vshrl.u32 %v359, 7
    %v361 = vsub.s32 0, %v360
    %v362 = vrot.slane %v235, %v361
    %v363 = vlaneseq
    %v364 = vshrl.u32 %v363, 7
    %v365 = vsub.s32 1, %v364
    %v366 = vrot.slane %v235, %v365
    %v369 = vmul.f32 %v354, %v362
    %v370 = vmul.f32 %v355, %v366
    %v371 = vmul.f32 %v356, %v362
    %v372 = vmul.f32 %v357, %v366
    %v373 = vtanh.pop %v369
    %v374 = vtanh.pop %v370
    %v375 = vtanh.pop %v371
    %v376 = vtanh.pop %v372
    %v377 = vmul.f32 %v373, %v362
    %v378 = vmul.f32 %v374, %v366
    %v379 = vmul.f32 %v375, %v362
    %v380 = vmul.f32 %v376, %v366
    %v382 = vlaneseq
    %v383 = vshrl.u32 %v382, 7
    %v384 = vsub.s32 0, %v383
    %v385 = vrot.slane %v236, %v384
    %v386 = vlaneseq
    %v387 = vshrl.u32 %v386, 7
    %v388 = vsub.s32 1, %v387
    %v389 = vrot.slane %v236, %v388
    %v392 = vadd.f32 %v377, %v385
    %v393 = vadd.f32 %v378, %v389
    %v394 = vadd.f32 %v379, %v385
    %v395 = vadd.f32 %v380, %v389
    %v396 = vmul.f32 %v392, 0.0
    %v397 = vmul.f32 %v394, 0.0
    %v398 = vmul.f32 %v392, %v393
    %v399 = vmul.f32 %v394, %v395
    %402 = vrot.lane.b32.xlu0 %v398, 64
    %v403 = vpop.permute.xlu0 %402
    %404 = vrot.lane.b32.xlu0 %v399, 64
    %v405 = vpop.permute.xlu0 %404
    %v408 = vadd.f32 %v396, %v403
    %v409 = vadd.f32 %v397, %v405
    %v410 = vtanh.pop %v408
    %v411 = vtanh.pop %v409
    %v412 = vmul.f32 %v393, %v410
    %v413 = vmul.f32 %v395, %v411
    %v414 = vrot.slane %v225, 5
    %v415 = vrot.slane %v227, 5
    %v416 = vrot.slane %v231, 5
    %v417 = vrot.slane %v233, 5
    %v422 = vadd.f32 %v148, %v414
    %v423 = vadd.f32 %v150, %v415
    %v424 = vadd.f32 %v154, %v416
    %v425 = vadd.f32 %v156, %v417
    %v426 = vpack.c.bf16 %v412, %v412
    %v427 = vpack.c.bf16 %v413, %v413
    %v430 = vunpack.c.l.b16 %v426
    %v431 = vunpack.c.l.b16 %v427
    %v432 = vrot.slane %v431, 7
    %vm433 = vcmask 1041409
    %v434 = vsel %vm433, %v432, %v430
    %v435 = vpack.c.b16 %v434, %v434
    %436 = vrot.lane.b32.xlu0 %v435, 64
    %v437 = vpop.permute.xlu0 %436
    %v439 = vsel %vm301, %v437, 0
    %441 = vmatprep.subr.bf16.mxu0 %v286
    %442 = vmatpush1.bf16.msra.mxu0 %v285
    %443 = vmatprep.subr.bf16.mxu0 %v288
    %444 = vmatpush1.bf16.msra.mxu0 %v287
    %445 = vmatprep.subr.bf16.mxu0 %v290
    %446 = vmatpush1.bf16.msra.mxu0 %v289
    %447 = vmatprep.subr.bf16.mxu0 %v292
    %448 = vmatpush1.bf16.msra.mxu0 %v291
    %449 = vmatprep.subr.bf16.mxu0 0
    %450 = vmatpush1.bf16.msra.mxu0 0
    %451 = vmatprep.subr.bf16.mxu0 0
    %452 = vmatpush1.bf16.msra.mxu0 0
    %453 = vmatprep.subr.bf16.mxu0 0
    %454 = vmatpush1.bf16.msra.mxu0 0
    %455 = vmatprep.subr.bf16.mxu0 0
    %456 = vmatpush1.bf16.msra.mxu0 0
    %457 = vmatprep.subr.bf16.mxu0 0
    %458 = vmatpush1.bf16.msra.mxu0 0
    %459 = vmatprep.subr.bf16.mxu0 0
    %460 = vmatpush1.bf16.msra.mxu0 0
    %461 = vmatprep.subr.bf16.mxu0 0
    %462 = vmatpush1.bf16.msra.mxu0 0
    %463 = vmatprep.subr.bf16.mxu0 0
    %464 = vmatpush1.bf16.msra.mxu0 0
    %465 = vmatprep.subr.bf16.mxu0 0
    %466 = vmatpush1.bf16.msra.mxu0 0
    %467 = vmatprep.subr.bf16.mxu0 0
    %468 = vmatpush1.bf16.msra.mxu0 0
    %469 = vmatprep.subr.bf16.mxu0 0
    %470 = vmatpush1.bf16.msra.mxu0 0
    %471 = vmatprep.subr.bf16.mxu0 0
    %472 = vmatpush1.bf16.msra.mxu0 0
    %473 = vmatprep.mubr.bf16.mxu0 0
    %474 = vmatmul.mubr.bf16.gmra.mrb[0].mxu0 %v439
    %v475 = vpop.f32.mrb[0].mxu0
    %v476 = vadd.f32 0.0, %v475
    %v477 = vpop.f32.mrb[0].mxu0
    %v478 = vadd.f32 0.0, %v477
    %v479 = vpop.f32.mrb[0].mxu0
    %v480 = vpop.f32.mrb[0].mxu0
    %481 = vdwg.mxu0
    %v484 = vrot.slane %v476, 7
    %v485 = vrot.slane %v478, 7
    %v490 = vadd.f32 %v422, %v484
    %v491 = vadd.f32 %v423, %v485
    %v492 = vadd.f32 %v424, %v476
    %v493 = vadd.f32 %v425, %v478
    %v494 = vmul.f32 %v490, %v362
    %v495 = vmul.f32 %v491, %v366
    %v496 = vmul.f32 %v492, %v362
    %v497 = vmul.f32 %v493, %v366
    %v498 = vtanh.pop %v494
    %v499 = vtanh.pop %v495
    %v500 = vtanh.pop %v496
    %v501 = vtanh.pop %v497
    %v502 = vmul.f32 %v498, %v362
    %v503 = vmul.f32 %v499, %v366
    %v504 = vmul.f32 %v500, %v362
    %v505 = vmul.f32 %v501, %v366
    %v506 = vadd.f32 %v502, %v385
    %v507 = vadd.f32 %v503, %v389
    %v508 = vadd.f32 %v504, %v385
    %v509 = vadd.f32 %v505, %v389
    %v512 = vrot.slane %v408, 7
    %v513 = vrot.slane %v409, 7
    %v516 = vmul.f32 %v506, %v512
    %v517 = vmul.f32 %v508, %v513
    %v518 = vmul.f32 %v506, %v507
    %v519 = vmul.f32 %v508, %v509
    %522 = vrot.lane.b32.xlu0 %v518, 64
    %v523 = vpop.permute.xlu0 %522
    %524 = vrot.lane.b32.xlu0 %v519, 64
    %v525 = vpop.permute.xlu0 %524
    %v528 = vadd.f32 %v516, %v523
    %v529 = vadd.f32 %v517, %v525
    %v530 = vtanh.pop %v528
    %v531 = vtanh.pop %v529
    %v532 = vmul.f32 %v507, %v530
    %v533 = vmul.f32 %v509, %v531
    %v534 = vrot.slane %v225, 3
    %v535 = vrot.slane %v227, 3
    %v536 = vrot.slane %v231, 3
    %v537 = vrot.slane %v233, 3
    %v542 = vadd.f32 %v148, %v534
    %v543 = vadd.f32 %v150, %v535
    %v544 = vadd.f32 %v154, %v536
    %v545 = vadd.f32 %v156, %v537
    %v546 = vpack.c.bf16 %v532, %v532
    %v547 = vpack.c.bf16 %v533, %v533
    %v550 = vunpack.c.l.b16 %v546
    %v551 = vunpack.c.l.b16 %v547
    %v552 = vrot.slane %v550, 1
    %v553 = vsel %vm433, %v551, %v552
    %v554 = vpack.c.b16 %v553, %v553
    %555 = vrot.lane.b32.xlu0 %v554, 64
    %v556 = vpop.permute.xlu0 %555
    %v558 = vsel %vm301, %v556, 0
    %560 = vmatprep.subr.bf16.mxu0 %v286
    %561 = vmatpush1.bf16.msra.mxu0 %v285
    %562 = vmatprep.subr.bf16.mxu0 %v288
    %563 = vmatpush1.bf16.msra.mxu0 %v287
    %564 = vmatprep.subr.bf16.mxu0 %v290
    %565 = vmatpush1.bf16.msra.mxu0 %v289
    %566 = vmatprep.subr.bf16.mxu0 %v292
    %567 = vmatpush1.bf16.msra.mxu0 %v291
    %568 = vmatprep.subr.bf16.mxu0 0
    %569 = vmatpush1.bf16.msra.mxu0 0
    %570 = vmatprep.subr.bf16.mxu0 0
    %571 = vmatpush1.bf16.msra.mxu0 0
    %572 = vmatprep.subr.bf16.mxu0 0
    %573 = vmatpush1.bf16.msra.mxu0 0
    %574 = vmatprep.subr.bf16.mxu0 0
    %575 = vmatpush1.bf16.msra.mxu0 0
    %576 = vmatprep.subr.bf16.mxu0 0
    %577 = vmatpush1.bf16.msra.mxu0 0
    %578 = vmatprep.subr.bf16.mxu0 0
    %579 = vmatpush1.bf16.msra.mxu0 0
    %580 = vmatprep.subr.bf16.mxu0 0
    %581 = vmatpush1.bf16.msra.mxu0 0
    %582 = vmatprep.subr.bf16.mxu0 0
    %583 = vmatpush1.bf16.msra.mxu0 0
    %584 = vmatprep.subr.bf16.mxu0 0
    %585 = vmatpush1.bf16.msra.mxu0 0
    %586 = vmatprep.subr.bf16.mxu0 0
    %587 = vmatpush1.bf16.msra.mxu0 0
    %588 = vmatprep.subr.bf16.mxu0 0
    %589 = vmatpush1.bf16.msra.mxu0 0
    %590 = vmatprep.subr.bf16.mxu0 0
    %591 = vmatpush1.bf16.msra.mxu0 0
    %592 = vmatprep.mubr.bf16.mxu0 0
    %593 = vmatmul.mubr.bf16.gmra.mrb[0].mxu0 %v558
    %v594 = vpop.f32.mrb[0].mxu0
    %v595 = vadd.f32 0.0, %v594
    %v596 = vpop.f32.mrb[0].mxu0
    %v597 = vadd.f32 0.0, %v596
    %v598 = vpop.f32.mrb[0].mxu0
    %v599 = vpop.f32.mrb[0].mxu0
    %600 = vdwg.mxu0
    %v603 = vrot.slane %v595, 6
    %v604 = vrot.slane %v597, 6
    %v605 = vrot.slane %v595, 7
    %v606 = vrot.slane %v597, 7
    %v611 = vadd.f32 %v542, %v603
    %v612 = vadd.f32 %v543, %v604
    %v613 = vadd.f32 %v544, %v605
    %v614 = vadd.f32 %v545, %v606
    %v615 = vmul.f32 %v611, %v362
    %v616 = vmul.f32 %v612, %v366
    %v617 = vmul.f32 %v613, %v362
    %v618 = vmul.f32 %v614, %v366
    %v619 = vtanh.pop %v615
    %v620 = vtanh.pop %v616
    %v621 = vtanh.pop %v617
    %v622 = vtanh.pop %v618
    %v623 = vmul.f32 %v619, %v362
    %v624 = vmul.f32 %v620, %v366
    %v625 = vmul.f32 %v621, %v362
    %v626 = vmul.f32 %v622, %v366
    %v627 = vadd.f32 %v623, %v385
    %v628 = vadd.f32 %v624, %v389
    %v629 = vadd.f32 %v625, %v385
    %v630 = vadd.f32 %v626, %v389
    %v633 = vrot.slane %v528, 7
    %v634 = vrot.slane %v529, 7
    %v637 = vmul.f32 %v627, %v633
    %v638 = vmul.f32 %v629, %v634
    %v639 = vmul.f32 %v627, %v628
    %v640 = vmul.f32 %v629, %v630
    %643 = vrot.lane.b32.xlu0 %v639, 64
    %v644 = vpop.permute.xlu0 %643
    %645 = vrot.lane.b32.xlu0 %v640, 64
    %v646 = vpop.permute.xlu0 %645
    %v649 = vadd.f32 %v637, %v644
    %v650 = vadd.f32 %v638, %v646
    %v651 = vtanh.pop %v649
    %v652 = vtanh.pop %v650
    %v653 = vmul.f32 %v628, %v651
    %v654 = vmul.f32 %v630, %v652
    %v655 = vrot.slane %v225, 1
    %v656 = vrot.slane %v227, 1
    %v657 = vrot.slane %v231, 1
    %v658 = vrot.slane %v233, 1
    %v663 = vadd.f32 %v148, %v655
    %v664 = vadd.f32 %v150, %v656
    %v665 = vadd.f32 %v154, %v657
    %v666 = vadd.f32 %v156, %v658
    %v667 = vpack.c.bf16 %v653, %v653
    %v668 = vpack.c.bf16 %v654, %v654
    %v671 = vunpack.c.l.b16 %v667
    %v672 = vunpack.c.l.b16 %v668
    %v673 = vrot.slane %v671, 2
    %v674 = vrot.slane %v672, 1
    %v675 = vsel %vm433, %v674, %v673
    %v676 = vpack.c.b16 %v675, %v675
    %677 = vrot.lane.b32.xlu0 %v676, 64
    %v678 = vpop.permute.xlu0 %677
    %v680 = vsel %vm301, %v678, 0
    %682 = vmatprep.subr.bf16.mxu0 %v286
    %683 = vmatpush1.bf16.msra.mxu0 %v285
    %684 = vmatprep.subr.bf16.mxu0 %v288
    %685 = vmatpush1.bf16.msra.mxu0 %v287
    %686 = vmatprep.subr.bf16.mxu0 %v290
    %687 = vmatpush1.bf16.msra.mxu0 %v289
    %688 = vmatprep.subr.bf16.mxu0 %v292
    %689 = vmatpush1.bf16.msra.mxu0 %v291
    %690 = vmatprep.subr.bf16.mxu0 0
    %691 = vmatpush1.bf16.msra.mxu0 0
    %692 = vmatprep.subr.bf16.mxu0 0
    %693 = vmatpush1.bf16.msra.mxu0 0
    %694 = vmatprep.subr.bf16.mxu0 0
    %695 = vmatpush1.bf16.msra.mxu0 0
    %696 = vmatprep.subr.bf16.mxu0 0
    %697 = vmatpush1.bf16.msra.mxu0 0
    %698 = vmatprep.subr.bf16.mxu0 0
    %699 = vmatpush1.bf16.msra.mxu0 0
    %700 = vmatprep.subr.bf16.mxu0 0
    %701 = vmatpush1.bf16.msra.mxu0 0
    %702 = vmatprep.subr.bf16.mxu0 0
    %703 = vmatpush1.bf16.msra.mxu0 0
    %704 = vmatprep.subr.bf16.mxu0 0
    %705 = vmatpush1.bf16.msra.mxu0 0
    %706 = vmatprep.subr.bf16.mxu0 0
    %707 = vmatpush1.bf16.msra.mxu0 0
    %708 = vmatprep.subr.bf16.mxu0 0
    %709 = vmatpush1.bf16.msra.mxu0 0
    %710 = vmatprep.subr.bf16.mxu0 0
    %711 = vmatpush1.bf16.msra.mxu0 0
    %712 = vmatprep.subr.bf16.mxu0 0
    %713 = vmatpush1.bf16.msra.mxu0 0
    %714 = vmatprep.mubr.bf16.mxu0 0
    %715 = vmatmul.mubr.bf16.gmra.mrb[0].mxu0 %v680
    %v716 = vpop.f32.mrb[0].mxu0
    %v717 = vadd.f32 0.0, %v716
    %v718 = vpop.f32.mrb[0].mxu0
    %v719 = vadd.f32 0.0, %v718
    %v720 = vpop.f32.mrb[0].mxu0
    %v721 = vpop.f32.mrb[0].mxu0
    %722 = vdwg.mxu0
    %v725 = vrot.slane %v717, 5
    %v726 = vrot.slane %v719, 5
    %v727 = vrot.slane %v717, 6
    %v728 = vrot.slane %v719, 6
    %v733 = vadd.f32 %v663, %v725
    %v734 = vadd.f32 %v664, %v726
    %v735 = vadd.f32 %v665, %v727
    %v736 = vadd.f32 %v666, %v728
    %v737 = vmul.f32 %v733, %v362
    %v738 = vmul.f32 %v734, %v366
    %v739 = vmul.f32 %v735, %v362
    %v740 = vmul.f32 %v736, %v366
    %v741 = vtanh.pop %v737
    %v742 = vtanh.pop %v738
    %v743 = vtanh.pop %v739
    %v744 = vtanh.pop %v740
    %v745 = vmul.f32 %v741, %v362
    %v746 = vmul.f32 %v742, %v366
    %v747 = vmul.f32 %v743, %v362
    %v748 = vmul.f32 %v744, %v366
    %v749 = vadd.f32 %v745, %v385
    %v750 = vadd.f32 %v746, %v389
    %v751 = vadd.f32 %v747, %v385
    %v752 = vadd.f32 %v748, %v389
    %v755 = vrot.slane %v649, 7
    %v756 = vrot.slane %v650, 7
    %v759 = vmul.f32 %v749, %v755
    %v760 = vmul.f32 %v751, %v756
    %v761 = vmul.f32 %v749, %v750
    %v762 = vmul.f32 %v751, %v752
    %765 = vrot.lane.b32.xlu0 %v761, 64
    %v766 = vpop.permute.xlu0 %765
    %767 = vrot.lane.b32.xlu0 %v762, 64
    %v768 = vpop.permute.xlu0 %767
    %v771 = vadd.f32 %v759, %v766
    %v772 = vadd.f32 %v760, %v768
    %v773 = vtanh.pop %v771
    %v774 = vtanh.pop %v772
    %v775 = vmul.f32 %v750, %v773
    %v776 = vmul.f32 %v752, %v774
    %v777 = vpack.c.bf16 %v775, %v775
    %v778 = vpack.c.bf16 %v776, %v776
    %v781 = vunpack.c.l.b16 %v777
    %v782 = vunpack.c.l.b16 %v778
    %v783 = vrot.slane %v781, 3
    %v784 = vrot.slane %v782, 2
    %v785 = vsel %vm433, %v784, %v783
    %v786 = vpack.c.b16 %v785, %v785
    %787 = vrot.lane.b32.xlu0 %v786, 64
    %v788 = vpop.permute.xlu0 %787
    %v790 = vsel %vm301, %v788, 0
    %792 = vmatprep.subr.bf16.mxu0 %v286
    %793 = vmatpush1.bf16.msra.mxu0 %v285
    %794 = vmatprep.subr.bf16.mxu0 %v288
    %795 = vmatpush1.bf16.msra.mxu0 %v287
    %796 = vmatprep.subr.bf16.mxu0 %v290
    %797 = vmatpush1.bf16.msra.mxu0 %v289
    %798 = vmatprep.subr.bf16.mxu0 %v292
    %799 = vmatpush1.bf16.msra.mxu0 %v291
    %800 = vmatprep.subr.bf16.mxu0 0
    %801 = vmatpush1.bf16.msra.mxu0 0
    %802 = vmatprep.subr.bf16.mxu0 0
    %803 = vmatpush1.bf16.msra.mxu0 0
    %804 = vmatprep.subr.bf16.mxu0 0
    %805 = vmatpush1.bf16.msra.mxu0 0
    %806 = vmatprep.subr.bf16.mxu0 0
    %807 = vmatpush1.bf16.msra.mxu0 0
    %808 = vmatprep.subr.bf16.mxu0 0
    %809 = vmatpush1.bf16.msra.mxu0 0
    %810 = vmatprep.subr.bf16.mxu0 0
    %811 = vmatpush1.bf16.msra.mxu0 0
    %812 = vmatprep.subr.bf16.mxu0 0
    %813 = vmatpush1.bf16.msra.mxu0 0
    %814 = vmatprep.subr.bf16.mxu0 0
    %815 = vmatpush1.bf16.msra.mxu0 0
    %816 = vmatprep.subr.bf16.mxu0 0
    %817 = vmatpush1.bf16.msra.mxu0 0
    %818 = vmatprep.subr.bf16.mxu0 0
    %819 = vmatpush1.bf16.msra.mxu0 0
    %820 = vmatprep.subr.bf16.mxu0 0
    %821 = vmatpush1.bf16.msra.mxu0 0
    %822 = vmatprep.subr.bf16.mxu0 0
    %823 = vmatpush1.bf16.msra.mxu0 0
    %824 = vmatprep.mubr.bf16.mxu0 0
    %825 = vmatmul.mubr.bf16.gmra.mrb[0].mxu0 %v790
    %v826 = vpop.f32.mrb[0].mxu0
    %v827 = vadd.f32 0.0, %v826
    %v828 = vpop.f32.mrb[0].mxu0
    %v829 = vadd.f32 0.0, %v828
    %v830 = vpop.f32.mrb[0].mxu0
    %v831 = vpop.f32.mrb[0].mxu0
    %832 = vdwg.mxu0
    %v835 = vrot.slane %v827, 4
    %v836 = vrot.slane %v829, 4
    %v837 = vrot.slane %v827, 5
    %v838 = vrot.slane %v829, 5
    %v843 = vadd.f32 %v257, %v835
    %v844 = vadd.f32 %v258, %v836
    %v845 = vadd.f32 %v259, %v837
    %v846 = vadd.f32 %v260, %v838
    %v847 = vmul.f32 %v843, %v362
    %v848 = vmul.f32 %v844, %v366
    %v849 = vmul.f32 %v845, %v362
    %v850 = vmul.f32 %v846, %v366
    %v851 = vtanh.pop %v847
    %v852 = vtanh.pop %v848
    %v853 = vtanh.pop %v849
    %v854 = vtanh.pop %v850
    %v855 = vmul.f32 %v851, %v362
    %v856 = vmul.f32 %v852, %v366
    %v857 = vmul.f32 %v853, %v362
    %v858 = vmul.f32 %v854, %v366
    %v859 = vadd.f32 %v855, %v385
    %v860 = vadd.f32 %v856, %v389
    %v861 = vadd.f32 %v857, %v385
    %v862 = vadd.f32 %v858, %v389
    %v865 = vrot.slane %v771, 7
    %v866 = vrot.slane %v772, 7
    %v869 = vmul.f32 %v859, %v865
    %v870 = vmul.f32 %v861, %v866
    %v871 = vmul.f32 %v859, %v860
    %v872 = vmul.f32 %v861, %v862
    %875 = vrot.lane.b32.xlu0 %v871, 64
    %v876 = vpop.permute.xlu0 %875
    %877 = vrot.lane.b32.xlu0 %v872, 64
    %v878 = vpop.permute.xlu0 %877
    %v881 = vadd.f32 %v869, %v876
    %v882 = vadd.f32 %v870, %v878
    %v883 = vtanh.pop %v881
    %v884 = vtanh.pop %v882
    %v885 = vmul.f32 %v860, %v883
    %v886 = vmul.f32 %v862, %v884
    %v887 = vpack.c.bf16 %v885, %v885
    %v888 = vpack.c.bf16 %v886, %v886
    %v891 = vunpack.c.l.b16 %v887
    %v892 = vunpack.c.l.b16 %v888
    %v893 = vrot.slane %v891, 4
    %v894 = vrot.slane %v892, 3
    %v895 = vsel %vm433, %v894, %v893
    %v896 = vpack.c.b16 %v895, %v895
    %897 = vrot.lane.b32.xlu0 %v896, 64
    %v898 = vpop.permute.xlu0 %897
    %v900 = vsel %vm301, %v898, 0
    %902 = vmatprep.subr.bf16.mxu0 %v286
    %903 = vmatpush1.bf16.msra.mxu0 %v285
    %904 = vmatprep.subr.bf16.mxu0 %v288
    %905 = vmatpush1.bf16.msra.mxu0 %v287
    %906 = vmatprep.subr.bf16.mxu0 %v290
    %907 = vmatpush1.bf16.msra.mxu0 %v289
    %908 = vmatprep.subr.bf16.mxu0 %v292
    %909 = vmatpush1.bf16.msra.mxu0 %v291
    %910 = vmatprep.subr.bf16.mxu0 0
    %911 = vmatpush1.bf16.msra.mxu0 0
    %912 = vmatprep.subr.bf16.mxu0 0
    %913 = vmatpush1.bf16.msra.mxu0 0
    %914 = vmatprep.subr.bf16.mxu0 0
    %915 = vmatpush1.bf16.msra.mxu0 0
    %916 = vmatprep.subr.bf16.mxu0 0
    %917 = vmatpush1.bf16.msra.mxu0 0
    %918 = vmatprep.subr.bf16.mxu0 0
    %919 = vmatpush1.bf16.msra.mxu0 0
    %920 = vmatprep.subr.bf16.mxu0 0
    %921 = vmatpush1.bf16.msra.mxu0 0
    %922 = vmatprep.subr.bf16.mxu0 0
    %923 = vmatpush1.bf16.msra.mxu0 0
    %924 = vmatprep.subr.bf16.mxu0 0
    %925 = vmatpush1.bf16.msra.mxu0 0
    %926 = vmatprep.subr.bf16.mxu0 0
    %927 = vmatpush1.bf16.msra.mxu0 0
    %928 = vmatprep.subr.bf16.mxu0 0
    %929 = vmatpush1.bf16.msra.mxu0 0
    %930 = vmatprep.subr.bf16.mxu0 0
    %931 = vmatpush1.bf16.msra.mxu0 0
    %932 = vmatprep.subr.bf16.mxu0 0
    %933 = vmatpush1.bf16.msra.mxu0 0
    %934 = vmatprep.mubr.bf16.mxu0 0
    %935 = vmatmul.mubr.bf16.gmra.mrb[0].mxu0 %v900
    %v936 = vpop.f32.mrb[0].mxu0
    %v937 = vadd.f32 0.0, %v936
    %v938 = vpop.f32.mrb[0].mxu0
    %v939 = vadd.f32 0.0, %v938
    %v940 = vpop.f32.mrb[0].mxu0
    %v941 = vpop.f32.mrb[0].mxu0
    %942 = vdwg.mxu0
    %v945 = vrot.slane %v937, 3
    %v946 = vrot.slane %v939, 3
    %v947 = vrot.slane %v937, 4
    %v948 = vrot.slane %v939, 4
    %v953 = vadd.f32 %v422, %v945
    %v954 = vadd.f32 %v423, %v946
    %v955 = vadd.f32 %v424, %v947
    %v956 = vadd.f32 %v425, %v948
    %v957 = vmul.f32 %v953, %v362
    %v958 = vmul.f32 %v954, %v366
    %v959 = vmul.f32 %v955, %v362
    %v960 = vmul.f32 %v956, %v366
    %v961 = vtanh.pop %v957
    %v962 = vtanh.pop %v958
    %v963 = vtanh.pop %v959
    %v964 = vtanh.pop %v960
    %v965 = vmul.f32 %v961, %v362
    %v966 = vmul.f32 %v962, %v366
    %v967 = vmul.f32 %v963, %v362
    %v968 = vmul.f32 %v964, %v366
    %v969 = vadd.f32 %v965, %v385
    %v970 = vadd.f32 %v966, %v389
    %v971 = vadd.f32 %v967, %v385
    %v972 = vadd.f32 %v968, %v389
    %v975 = vrot.slane %v881, 7
    %v976 = vrot.slane %v882, 7
    %v979 = vmul.f32 %v969, %v975
    %v980 = vmul.f32 %v971, %v976
    %v981 = vmul.f32 %v969, %v970
    %v982 = vmul.f32 %v971, %v972
    %985 = vrot.lane.b32.xlu0 %v981, 64
    %v986 = vpop.permute.xlu0 %985
    %987 = vrot.lane.b32.xlu0 %v982, 64
    %v988 = vpop.permute.xlu0 %987
    %v991 = vadd.f32 %v979, %v986
    %v992 = vadd.f32 %v980, %v988
    %v993 = vtanh.pop %v991
    %v994 = vtanh.pop %v992
    %v995 = vmul.f32 %v970, %v993
    %v996 = vmul.f32 %v972, %v994
    %v997 = vpack.c.bf16 %v995, %v995
    %v998 = vpack.c.bf16 %v996, %v996
    %v1001 = vunpack.c.l.b16 %v997
    %v1002 = vunpack.c.l.b16 %v998
    %v1003 = vrot.slane %v1001, 5
    %v1004 = vrot.slane %v1002, 4
    %v1005 = vsel %vm433, %v1004, %v1003
    %v1006 = vpack.c.b16 %v1005, %v1005
    %1007 = vrot.lane.b32.xlu0 %v1006, 64
    %v1008 = vpop.permute.xlu0 %1007
    %v1010 = vsel %vm301, %v1008, 0
    %1012 = vmatprep.subr.bf16.mxu0 %v286
    %1013 = vmatpush1.bf16.msra.mxu0 %v285
    %1014 = vmatprep.subr.bf16.mxu0 %v288
    %1015 = vmatpush1.bf16.msra.mxu0 %v287
    %1016 = vmatprep.subr.bf16.mxu0 %v290
    %1017 = vmatpush1.bf16.msra.mxu0 %v289
    %1018 = vmatprep.subr.bf16.mxu0 %v292
    %1019 = vmatpush1.bf16.msra.mxu0 %v291
    %1020 = vmatprep.subr.bf16.mxu0 0
    %1021 = vmatpush1.bf16.msra.mxu0 0
    %1022 = vmatprep.subr.bf16.mxu0 0
    %1023 = vmatpush1.bf16.msra.mxu0 0
    %1024 = vmatprep.subr.bf16.mxu0 0
    %1025 = vmatpush1.bf16.msra.mxu0 0
    %1026 = vmatprep.subr.bf16.mxu0 0
    %1027 = vmatpush1.bf16.msra.mxu0 0
    %1028 = vmatprep.subr.bf16.mxu0 0
    %1029 = vmatpush1.bf16.msra.mxu0 0
    %1030 = vmatprep.subr.bf16.mxu0 0
    %1031 = vmatpush1.bf16.msra.mxu0 0
    %1032 = vmatprep.subr.bf16.mxu0 0
    %1033 = vmatpush1.bf16.msra.mxu0 0
    %1034 = vmatprep.subr.bf16.mxu0 0
    %1035 = vmatpush1.bf16.msra.mxu0 0
    %1036 = vmatprep.subr.bf16.mxu0 0
    %1037 = vmatpush1.bf16.msra.mxu0 0
    %1038 = vmatprep.subr.bf16.mxu0 0
    %1039 = vmatpush1.bf16.msra.mxu0 0
    %1040 = vmatprep.subr.bf16.mxu0 0
    %1041 = vmatpush1.bf16.msra.mxu0 0
    %1042 = vmatprep.subr.bf16.mxu0 0
    %1043 = vmatpush1.bf16.msra.mxu0 0
    %1044 = vmatprep.mubr.bf16.mxu0 0
    %1045 = vmatmul.mubr.bf16.gmra.mrb[0].mxu0 %v1010
    %v1046 = vpop.f32.mrb[0].mxu0
    %v1047 = vadd.f32 0.0, %v1046
    %v1048 = vpop.f32.mrb[0].mxu0
    %v1049 = vadd.f32 0.0, %v1048
    %v1050 = vpop.f32.mrb[0].mxu0
    %v1051 = vpop.f32.mrb[0].mxu0
    %1052 = vdwg.mxu0
    %v1055 = vrot.slane %v1047, 2
    %v1056 = vrot.slane %v1049, 2
    %v1057 = vrot.slane %v1047, 3
    %v1058 = vrot.slane %v1049, 3
    %v1063 = vadd.f32 %v542, %v1055
    %v1064 = vadd.f32 %v543, %v1056
    %v1065 = vadd.f32 %v544, %v1057
    %v1066 = vadd.f32 %v545, %v1058
    %v1067 = vmul.f32 %v1063, %v362
    %v1068 = vmul.f32 %v1064, %v366
    %v1069 = vmul.f32 %v1065, %v362
    %v1070 = vmul.f32 %v1066, %v366
    %v1071 = vtanh.pop %v1067
    %v1072 = vtanh.pop %v1068
    %v1073 = vtanh.pop %v1069
    %v1074 = vtanh.pop %v1070
    %v1075 = vmul.f32 %v1071, %v362
    %v1076 = vmul.f32 %v1072, %v366
    %v1077 = vmul.f32 %v1073, %v362
    %v1078 = vmul.f32 %v1074, %v366
    %v1079 = vadd.f32 %v1075, %v385
    %v1080 = vadd.f32 %v1076, %v389
    %v1081 = vadd.f32 %v1077, %v385
    %v1082 = vadd.f32 %v1078, %v389
    %v1085 = vrot.slane %v991, 7
    %v1086 = vrot.slane %v992, 7
    %v1089 = vmul.f32 %v1079, %v1085
    %v1090 = vmul.f32 %v1081, %v1086
    %v1091 = vmul.f32 %v1079, %v1080
    %v1092 = vmul.f32 %v1081, %v1082
    %1095 = vrot.lane.b32.xlu0 %v1091, 64
    %v1096 = vpop.permute.xlu0 %1095
    %1097 = vrot.lane.b32.xlu0 %v1092, 64
    %v1098 = vpop.permute.xlu0 %1097
    %v1101 = vadd.f32 %v1089, %v1096
    %v1102 = vadd.f32 %v1090, %v1098
    %v1103 = vtanh.pop %v1101
    %v1104 = vtanh.pop %v1102
    %v1105 = vmul.f32 %v1080, %v1103
    %v1106 = vmul.f32 %v1082, %v1104
    %v1107 = vpack.c.bf16 %v1105, %v1105
    %v1108 = vpack.c.bf16 %v1106, %v1106
    %v1111 = vunpack.c.l.b16 %v1107
    %v1112 = vunpack.c.l.b16 %v1108
    %v1113 = vrot.slane %v1111, 6
    %v1114 = vrot.slane %v1112, 5
    %v1115 = vsel %vm433, %v1114, %v1113
    %v1116 = vpack.c.b16 %v1115, %v1115
    %1117 = vrot.lane.b32.xlu0 %v1116, 64
    %v1118 = vpop.permute.xlu0 %1117
    %v1120 = vsel %vm301, %v1118, 0
    %1122 = vmatprep.subr.bf16.mxu0 %v286
    %1123 = vmatpush1.bf16.msra.mxu0 %v285
    %1124 = vmatprep.subr.bf16.mxu0 %v288
    %1125 = vmatpush1.bf16.msra.mxu0 %v287
    %1126 = vmatprep.subr.bf16.mxu0 %v290
    %1127 = vmatpush1.bf16.msra.mxu0 %v289
    %1128 = vmatprep.subr.bf16.mxu0 %v292
    %1129 = vmatpush1.bf16.msra.mxu0 %v291
    %1130 = vmatprep.subr.bf16.mxu0 0
    %1131 = vmatpush1.bf16.msra.mxu0 0
    %1132 = vmatprep.subr.bf16.mxu0 0
    %1133 = vmatpush1.bf16.msra.mxu0 0
    %1134 = vmatprep.subr.bf16.mxu0 0
    %1135 = vmatpush1.bf16.msra.mxu0 0
    %1136 = vmatprep.subr.bf16.mxu0 0
    %1137 = vmatpush1.bf16.msra.mxu0 0
    %1138 = vmatprep.subr.bf16.mxu0 0
    %1139 = vmatpush1.bf16.msra.mxu0 0
    %1140 = vmatprep.subr.bf16.mxu0 0
    %1141 = vmatpush1.bf16.msra.mxu0 0
    %1142 = vmatprep.subr.bf16.mxu0 0
    %1143 = vmatpush1.bf16.msra.mxu0 0
    %1144 = vmatprep.subr.bf16.mxu0 0
    %1145 = vmatpush1.bf16.msra.mxu0 0
    %1146 = vmatprep.subr.bf16.mxu0 0
    %1147 = vmatpush1.bf16.msra.mxu0 0
    %1148 = vmatprep.subr.bf16.mxu0 0
    %1149 = vmatpush1.bf16.msra.mxu0 0
    %1150 = vmatprep.subr.bf16.mxu0 0
    %1151 = vmatpush1.bf16.msra.mxu0 0
    %1152 = vmatprep.subr.bf16.mxu0 0
    %1153 = vmatpush1.bf16.msra.mxu0 0
    %1154 = vmatprep.mubr.bf16.mxu0 0
    %1155 = vmatmul.mubr.bf16.gmra.mrb[0].mxu0 %v1120
    %v1156 = vpop.f32.mrb[0].mxu0
    %v1157 = vadd.f32 0.0, %v1156
    %v1158 = vpop.f32.mrb[0].mxu0
    %v1159 = vadd.f32 0.0, %v1158
    %v1160 = vpop.f32.mrb[0].mxu0
    %v1161 = vpop.f32.mrb[0].mxu0
    %1162 = vdwg.mxu0
    %v1165 = vrot.slane %v1157, 1
    %v1166 = vrot.slane %v1159, 1
    %v1167 = vrot.slane %v1157, 2
    %v1168 = vrot.slane %v1159, 2
    %v1173 = vadd.f32 %v663, %v1165
    %v1174 = vadd.f32 %v664, %v1166
    %v1175 = vadd.f32 %v665, %v1167
    %v1176 = vadd.f32 %v666, %v1168
    %v1177 = vmul.f32 %v1173, %v362
    %v1178 = vmul.f32 %v1174, %v366
    %v1179 = vmul.f32 %v1175, %v362
    %v1180 = vmul.f32 %v1176, %v366
    %v1181 = vtanh.pop %v1177
    %v1182 = vtanh.pop %v1178
    %v1183 = vtanh.pop %v1179
    %v1184 = vtanh.pop %v1180
    %v1185 = vmul.f32 %v1181, %v362
    %v1186 = vmul.f32 %v1182, %v366
    %v1187 = vmul.f32 %v1183, %v362
    %v1188 = vmul.f32 %v1184, %v366
    %v1189 = vadd.f32 %v1185, %v385
    %v1190 = vadd.f32 %v1186, %v389
    %v1191 = vadd.f32 %v1187, %v385
    %v1192 = vadd.f32 %v1188, %v389
    %v1195 = vrot.slane %v1101, 7
    %v1196 = vrot.slane %v1102, 7
    %v1199 = vmul.f32 %v1189, %v1195
    %v1200 = vmul.f32 %v1191, %v1196
    %v1201 = vmul.f32 %v1189, %v1190
    %v1202 = vmul.f32 %v1191, %v1192
    %1205 = vrot.lane.b32.xlu0 %v1201, 64
    %v1206 = vpop.permute.xlu0 %1205
    %1207 = vrot.lane.b32.xlu0 %v1202, 64
    %v1208 = vpop.permute.xlu0 %1207
    %v1211 = vadd.f32 %v1199, %v1206
    %v1212 = vadd.f32 %v1200, %v1208
    %v1213 = vtanh.pop %v1211
    %v1214 = vtanh.pop %v1212
    %v1215 = vmul.f32 %v1190, %v1213
    %v1216 = vmul.f32 %v1192, %v1214
    %v1219 = vrot.slane %v1216, 7
    %1220 = vrot.lane.b32.xlu0 %v1215, 64
    %v1221 = vpop.permute.xlu0 %1220
    %1222 = vrot.lane.b32.xlu0 %v1219, 64
    %v1223 = vpop.permute.xlu0 %1222
    %v1228 = vrot.slane %v1212, 7
    %v1231 = vsel %vm301, %v1221, %v1211
    %v1232 = vsel %vm301, %v1223, %v1228
    %v1233 = vpack.c.bf16 %v1232, %v1231
    %v1234 = vld [vmem:[%s5] sm:$0xf]
    %v1235 = vld [vmem:[%s5 + $0x4] sm:$0xf]
    %v1236 = vld [vmem:[%s5 + $0x8] sm:$0xf]
    %v1237 = vld [vmem:[%s5 + $0xc] sm:$0xf]
    %v1238 = vld [vmem:[%s5 + $0x10] sm:$0xf]
    %v1239 = vld [vmem:[%s5 + $0x14] sm:$0xf]
    %v1240 = vld [vmem:[%s5 + $0x18] sm:$0xf]
    %v1241 = vld [vmem:[%s5 + $0x1c] sm:$0xf]
    %v1242 = vld [vmem:[%s5 + $0x20] sm:$0xf]
    %v1243 = vld [vmem:[%s5 + $0x24] sm:$0xf]
    %v1244 = vld [vmem:[%s5 + $0x28] sm:$0xf]
    %v1245 = vld [vmem:[%s5 + $0x2c] sm:$0xf]
    %v1246 = vld [vmem:[%s5 + $0x30] sm:$0xf]
    %v1247 = vld [vmem:[%s5 + $0x34] sm:$0xf]
    %v1248 = vld [vmem:[%s5 + $0x38] sm:$0xf]
    %v1249 = vld [vmem:[%s5 + $0x3c] sm:$0xf]
    %v1250 = vld [vmem:[%s6] sm:$0x1]
    %v1252 = vlaneseq
    %v1253 = vshrl.u32 %v1252, 7
    %v1254 = vsub.s32 0, %v1253
    %v1255 = vrot.slane %v1250, %v1254
    %v1258 = vshrl.u32 %v1233, 16
    %v1260 = vrot.slane %v1258, 3
    %v1261 = vshll.u32 %v1233, 16
    %v1263 = vrot.slane %v1261, 4
    %v1264 = vor.u32 %v1260, %v1263
    %v1282 = vunpack.c.l.b16 %v1234
    %v1283 = vunpack.c.l.b16 %v1235
    %v1284 = vunpack.c.l.b16 %v1236
    %v1285 = vunpack.c.l.b16 %v1237
    %v1286 = vunpack.c.l.b16 %v1238
    %v1287 = vunpack.c.l.b16 %v1239
    %v1288 = vunpack.c.l.b16 %v1240
    %v1289 = vunpack.c.l.b16 %v1241
    %v1290 = vunpack.c.l.b16 %v1242
    %v1291 = vunpack.c.l.b16 %v1243
    %v1292 = vunpack.c.l.b16 %v1244
    %v1293 = vunpack.c.l.b16 %v1245
    %v1294 = vunpack.c.l.b16 %v1246
    %v1295 = vunpack.c.l.b16 %v1247
    %v1296 = vunpack.c.l.b16 %v1248
    %v1297 = vunpack.c.l.b16 %v1249
    %v1298 = vpack.c.b16 %v1283, %v1282
    %v1299 = vpack.c.b16 %v1285, %v1284
    %v1300 = vpack.c.b16 %v1287, %v1286
    %v1301 = vpack.c.b16 %v1289, %v1288
    %v1302 = vpack.c.b16 %v1291, %v1290
    %v1303 = vpack.c.b16 %v1293, %v1292
    %v1304 = vpack.c.b16 %v1295, %v1294
    %v1305 = vpack.c.b16 %v1297, %v1296
    %1314 = vmatprep.subr.bf16.mxu0 0
    %1315 = vmatpush1.bf16.msra.mxu0 %v1298
    %1316 = vmatprep.subr.bf16.mxu0 0
    %1317 = vmatpush1.bf16.msra.mxu0 %v1299
    %1318 = vmatprep.subr.bf16.mxu0 0
    %1319 = vmatpush1.bf16.msra.mxu0 %v1300
    %1320 = vmatprep.subr.bf16.mxu0 0
    %1321 = vmatpush1.bf16.msra.mxu0 %v1301
    %1322 = vmatprep.subr.bf16.mxu0 0
    %1323 = vmatpush1.bf16.msra.mxu0 %v1302
    %1324 = vmatprep.subr.bf16.mxu0 0
    %1325 = vmatpush1.bf16.msra.mxu0 %v1303
    %1326 = vmatprep.subr.bf16.mxu0 0
    %1327 = vmatpush1.bf16.msra.mxu0 %v1304
    %1328 = vmatprep.subr.bf16.mxu0 0
    %1329 = vmatpush1.bf16.msra.mxu0 %v1305
    %1330 = vmatprep.subr.bf16.mxu0 0
    %1331 = vmatpush1.bf16.msra.mxu0 0
    %1332 = vmatprep.subr.bf16.mxu0 0
    %1333 = vmatpush1.bf16.msra.mxu0 0
    %1334 = vmatprep.subr.bf16.mxu0 0
    %1335 = vmatpush1.bf16.msra.mxu0 0
    %1336 = vmatprep.subr.bf16.mxu0 0
    %1337 = vmatpush1.bf16.msra.mxu0 0
    %1338 = vmatprep.subr.bf16.mxu0 0
    %1339 = vmatpush1.bf16.msra.mxu0 0
    %1340 = vmatprep.subr.bf16.mxu0 0
    %1341 = vmatpush1.bf16.msra.mxu0 0
    %1342 = vmatprep.subr.bf16.mxu0 0
    %1343 = vmatpush1.bf16.msra.mxu0 0
    %1344 = vmatprep.subr.bf16.mxu0 0
    %1345 = vmatpush1.bf16.msra.mxu0 0
    %1346 = vmatprep.mubr.bf16.mxu0 0
    %1347 = vmatmul.mubr.bf16.gmra.mrb[0].mxu0 %v1264
    %v1348 = vpop.f32.mrb[0].mxu0
    %v1349 = vadd.f32 %v1255, %v1348
    %v1350 = vpop.f32.mrb[0].mxu0
    %v1351 = vpop.f32.mrb[0].mxu0
    %v1352 = vpop.f32.mrb[0].mxu0
    %1353 = vdwg.mxu0
    %v1354 = vxor.u32 %v1349, 2147483648
    %v1355 = vmul.f32 %v1354, 1.442695
    %v1356 = vpow.pop %v1355
    %v1357 = vadd.f32 %v1356, 1.0
    %v1358 = vrcp.pop %v1357
    %v1359 = vmul.f32 1.0, %v1358
    %vm1360 = vcmask 25600
    %1361 = vst.msk [vmem:[#allocation5] sm:$0x3] %vm1360, %v1359
    // Predicated region
    $region34: #{words_rnn_forward.1} parent=1 // pred_check
      _
    $region35: #{words_rnn_forward.1} parent=1 // pred_check_branch
      %1363 = sbr.rel (0) target = $region37
    $region36: #{words_rnn_forward.1} parent=1 // pred_region
      %s1365 = ssub.s32 32, 32
      %1366 = vsyncadd [#allocation4], %s1365
      %s1368 = sshll.u32 [#allocation5], 4
      %s1369 = int_to_ptr.vmem [resolvable:$true] %s1368
      %1371 = dma.vmem_to_hbm [thread:$0]  %s1369, 32, %s7, [#allocation4]
    $region37: #{words_rnn_forward.1} parent=1 // pred_fallthru
      _
    // Predicated region
    $region38: #{words_rnn_forward.1} parent=1 // pred_check
      _
    $region39: #{words_rnn_forward.1} parent=1 // pred_check_branch
      %1373 = sbr.rel (0) target = $region41
    $region40: #{words_rnn_forward.1} parent=1 // pred_region
      %1374 = dma.done [#allocation4], 32
    $region41: #{words_rnn_forward.1} parent=1 // pred_fallthru
      _
    %1375 = vsyncpa [#allocation3], 1
    %1376 = vsyncpa [#allocation4], 1

</llo_original>
